<compile_context>
chip_gen: v7x
topology: tpu7x:2x2x1
jax: 0.10.0
libtpu: 0.0.40
codegen_flags: <defaults>
</compile_context>

<pallas_src>
import jax
import jax.numpy as jnp
from jax import lax
from jax.experimental import pallas as pl
from jax.experimental.pallas import tpu as pltpu

EPS = 1e-5          # BatchNorm2d default eps
NEG_SLOPE = 0.01    # LeakyReLU default negative_slope


def _round_up(a, b):
    return (a + b - 1) // b * b


def _pick_t_oh(Ho, Wo_pad, C, Cp, itemsize, budget_bytes):
    """Largest output-row tile (multiple of 8) whose double-buffered working
    set fits the VMEM budget; portable across v5e/v6e/v7x."""
    target = max(8, _round_up(max(1, 2048 // max(Wo_pad, 1)), 8))
    t_oh = min(_round_up(Ho, 8), target)
    lane_c = _round_up(C, 128)
    wpe8 = _round_up(Wo_pad + 1, 8)
    wpo8 = _round_up(Wo_pad, 8)

    def vmem_bytes(t):
        in_elems = (2 * t + 2) * (wpe8 + wpo8) * lane_c     # 4 planes + extras
        y_elems = t * Wo_pad * Cp
        w_elems = 9 * _round_up(C, 8) * Cp
        return (2 * (in_elems + y_elems) * itemsize          # double-buffered
                + 2 * w_elems * itemsize + 2 * 8 * Cp * 4)

    while t_oh > 8 and vmem_bytes(t_oh) > budget_bytes:
        t_oh -= 8
    return t_oh


def downsample(x, w, gamma, beta, *, compute_dtype=jnp.bfloat16):
    """x: (N, C, H, W); w: (C, C, 3, 3); gamma/beta: (C,). Returns NCHW."""
    N, C, H, W = x.shape
    Ho = (H - 1) // 2 + 1
    Wo = (W - 1) // 2 + 1
    Cp = _round_up(max(C, 128), 128)              # lane-dense conv output width
    Wo_pad = _round_up(Wo, 8)                     # keeps all reshapes 8-aligned

    itemsize = int(jnp.dtype(compute_dtype).itemsize)
    vmem_limit = 32 * 1024 * 1024                 # >= scoped default on all gens
    t_oh = _pick_t_oh(Ho, Wo_pad, C, Cp, itemsize, budget_bytes=20 * 1024 * 1024)
    n_t = -(-Ho // t_oh)
    Ho_pad = n_t * t_oh
    TMW = t_oh * Wo_pad
    M = N * Ho * Wo                               # real element count for BN

    # ---- plain-JAX glue (cheap, fused by XLA): bf16 NHWC reflect-pad and the
    # four row/column parity planes.  Every conv tap becomes a contiguous
    # slice of these planes inside the kernel -> no im2col in HBM.
    xn = jnp.transpose(x, (0, 2, 3, 1)).astype(compute_dtype)
    xp = jnp.pad(xn, ((0, 0), (1, 1), (1, 1), (0, 0)), mode="reflect")

    hpe, hpo = Ho_pad + 1, Ho_pad
    wpe, wpo = Wo_pad + 1, Wo_pad

    def parity_plane(r0, c0, nrows, ncols):
        p = xp[:, r0::2, c0::2, :][:, :nrows, :ncols, :]
        pr, pc = nrows - p.shape[1], ncols - p.shape[2]
        if pr or pc:
            p = jnp.pad(p, ((0, 0), (0, pr), (0, pc), (0, 0)))
        return p

    ee = parity_plane(0, 0, hpe, wpe)   # even rows, even cols
    eo = parity_plane(0, 1, hpe, wpo)   # even rows, odd  cols
    oe = parity_plane(1, 0, hpo, wpe)   # odd  rows, even cols
    oo = parity_plane(1, 1, hpo, wpo)   # odd  rows, odd  cols

    # per-tap weight matrices: (co, ci, kh, kw) -> (kh*3+kw, ci, co_padded)
    wt = jnp.transpose(w, (2, 3, 1, 0)).reshape(9, C, C)
    wt = jnp.pad(wt, ((0, 0), (0, 0), (0, Cp - C))).astype(compute_dtype)

    # ---------------- pass 1: fused 9-tap conv + per-tile BN partial stats
    def conv_stats_kernel(ee_ref, eex_ref, eo_ref, eox_ref, oe_ref, oo_ref,
                          wt_ref, y_ref, st_ref):
        t = pl.program_id(1)
        ee_v = ee_ref[0]                     # (t_oh, Wo_pad+1, C)
        eo_v = eo_ref[0]                     # (t_oh, Wo_pad,   C)
        oe_v = oe_ref[0]
        oo_v = oo_ref[0]
        # rows shifted by one output row (kh = 2 taps); last row comes from
        # the 1-row "extra" block of the next band.
        ee2 = jnp.concatenate([ee_v[1:], eex_ref[0]], axis=0)
        eo2 = jnp.concatenate([eo_v[1:], eox_ref[0]], axis=0)

        taps = (
            ee_v[:, 0:Wo_pad], eo_v[:, 0:Wo_pad], ee_v[:, 1:Wo_pad + 1],  # kh=0
            oe_v[:, 0:Wo_pad], oo_v[:, 0:Wo_pad], oe_v[:, 1:Wo_pad + 1],  # kh=1
            ee2[:, 0:Wo_pad], eo2[:, 0:Wo_pad], ee2[:, 1:Wo_pad + 1],     # kh=2
        )
        acc = jnp.zeros((TMW, Cp), jnp.float32)
        for k in range(9):
            acc = acc + jnp.dot(taps[k].reshape(TMW, C), wt_ref[k],
                                preferred_element_type=jnp.float32)

        y_ref[...] = acc.reshape(1, TMW, Cp).astype(y_ref.dtype)

        # Per-tile partial BN stats from the f32 accumulator.  Rows/cols that
        # only exist because of Ho/Wo tile padding are masked out so they can
        # never pollute the batch statistics.
        valid_rows = jnp.clip(Ho - t * t_oh, 0, t_oh)
        oh_i = lax.broadcasted_iota(jnp.int32, (t_oh, Wo_pad, 1), 0)
        ow_i = lax.broadcasted_iota(jnp.int32, (t_oh, Wo_pad, 1), 1)
        mask = ((oh_i < valid_rows) & (ow_i < Wo)).reshape(TMW, 1)
        accm = jnp.where(mask, acc, 0.0)
        s = jnp.sum(accm, axis=0, keepdims=True)              # (1, Cp)
        q = jnp.sum(accm * accm, axis=0, keepdims=True)       # (1, Cp)
        st_ref[...] = jnp.concatenate(
            [s, q, jnp.zeros((6, Cp), jnp.float32)], axis=0).reshape(1, 1, 8, Cp)

    grid = (N, n_t)
    y, stats = pl.pallas_call(
        conv_stats_kernel,
        out_shape=(
            jax.ShapeDtypeStruct((N, Ho_pad * Wo_pad, Cp), compute_dtype),
            jax.ShapeDtypeStruct((N, n_t, 8, Cp), jnp.float32),
        ),
        grid=grid,
        in_specs=[
            pl.BlockSpec((1, t_oh, wpe, C), lambda n, t: (n, t, 0, 0)),
            pl.BlockSpec((1, 1, wpe, C), lambda n, t: (n, (t + 1) * t_oh, 0, 0)),
            pl.BlockSpec((1, t_oh, wpo, C), lambda n, t: (n, t, 0, 0)),
            pl.BlockSpec((1, 1, wpo, C), lambda n, t: (n, (t + 1) * t_oh, 0, 0)),
            pl.BlockSpec((1, t_oh, wpe, C), lambda n, t: (n, t, 0, 0)),
            pl.BlockSpec((1, t_oh, wpo, C), lambda n, t: (n, t, 0, 0)),
            pl.BlockSpec((9, C, Cp), lambda n, t: (0, 0, 0)),   # weights resident
        ],
        out_specs=(
            pl.BlockSpec((1, TMW, Cp), lambda n, t: (n, t, 0)),
            pl.BlockSpec((1, 1, 8, Cp), lambda n, t: (n, t, 0, 0)),
        ),
        compiler_params=pltpu.CompilerParams(
            dimension_semantics=("parallel", "parallel"),
            vmem_limit_bytes=vmem_limit),
        cost_estimate=pl.CostEstimate(
            flops=int(2 * N * Ho_pad * Wo_pad * 9 * C * Cp
                      + 4 * N * Ho_pad * Wo_pad * Cp),
            transcendentals=0,
            bytes_accessed=int(4 * N * Ho_pad * Wo_pad * C * itemsize
                               + 9 * C * Cp * itemsize
                               + N * Ho_pad * Wo_pad * Cp * itemsize
                               + N * n_t * 8 * Cp * 4)),
    )(ee, ee, eo, eo, oe, oo, wt)

    # ---- fold BatchNorm into scale/shift once (tiny (Cp,) math in f32).
    s1 = stats[:, :, 0, :].reshape(-1, Cp).sum(axis=0)
    s2 = stats[:, :, 1, :].reshape(-1, Cp).sum(axis=0)
    mean = s1 / float(M)
    var = jnp.maximum(s2 / float(M) - mean * mean, 0.0)   # biased (training) var
    gamma_p = jnp.pad(gamma.astype(jnp.float32), (0, Cp - C), constant_values=1.0)
    beta_p = jnp.pad(beta.astype(jnp.float32), (0, Cp - C))
    scale_v = gamma_p * lax.rsqrt(var + EPS)
    scale = scale_v.reshape(1, Cp)
    shift = (beta_p - mean * scale_v).reshape(1, Cp)

    # ---------------- pass 2: folded BN + LeakyReLU, bf16 in / bf16 out.
    def bn_lrelu_kernel(y_ref, sc_ref, sh_ref, o_ref):
        z = y_ref[...].astype(jnp.float32) * sc_ref[...] + sh_ref[...]
        z = jnp.where(z >= 0, z, NEG_SLOPE * z)
        o_ref[...] = z[:, :, 0:C].astype(o_ref.dtype)

    out = pl.pallas_call(
        bn_lrelu_kernel,
        out_shape=jax.ShapeDtypeStruct((N, Ho_pad * Wo_pad, C), compute_dtype),
        grid=grid,
        in_specs=[
            pl.BlockSpec((1, TMW, Cp), lambda n, t: (n, t, 0)),
            pl.BlockSpec((1, Cp), lambda n, t: (0, 0)),
            pl.BlockSpec((1, Cp), lambda n, t: (0, 0)),
        ],
        out_specs=pl.BlockSpec((1, TMW, C), lambda n, t: (n, t, 0)),
        compiler_params=pltpu.CompilerParams(
            dimension_semantics=("parallel", "parallel"),
            vmem_limit_bytes=vmem_limit),
        cost_estimate=pl.CostEstimate(
            flops=int(4 * N * Ho_pad * Wo_pad * Cp),
            transcendentals=0,
            bytes_accessed=int(N * Ho_pad * Wo_pad * (Cp + C) * itemsize
                               + 2 * Cp * 4)),
    )(y, scale, shift)

    # TODO(synk): emit NCHW directly from pass 2 so this reshape/transpose/cast
    # (one extra read+write of the output in XLA) disappears.
    out = out.reshape(N, Ho_pad, Wo_pad, C)[:, :Ho, :Wo, :]
    out = jnp.transpose(out, (0, 3, 1, 2))
    return out.astype(x.dtype)


def _reference(x, w, gamma, beta):
    xp = jnp.pad(x, ((0, 0), (0, 0), (1, 1), (1, 1)), mode="reflect")
    y = lax.conv_general_dilated(
        xp, w, window_strides=(2, 2), padding="VALID",
        dimension_numbers=("NCHW", "OIHW", "NCHW"))
    mean = y.mean(axis=(0, 2, 3), keepdims=True)
    var = ((y - mean) ** 2).mean(axis=(0, 2, 3), keepdims=True)
    yh = (y - mean) / jnp.sqrt(var + EPS)
    yb = yh * gamma.reshape(1, -1, 1, 1) + beta.reshape(1, -1, 1, 1)
    return jnp.where(yb >= 0, yb, NEG_SLOPE * yb)


if __name__ == "__main__":
    key = jax.random.PRNGKey(0)
    kx, kw_, kg, kb, kx2, kw2 = jax.random.split(key, 6)

    # ---- Test 1: even spatial dims; strict f32 path + fast bf16 path.
    N, C, H, W = 2, 4, 16, 16
    x = jax.random.normal(kx, (N, C, H, W), dtype=jnp.float32)
    bound = 1.0 / (C * 9) ** 0.5
    w = jax.random.uniform(kw_, (C, C, 3, 3), jnp.float32, -bound, bound)
    gamma = 1.0 + 0.1 * jax.random.normal(kg, (C,), dtype=jnp.float32)
    beta = 0.1 * jax.random.normal(kb, (C,), dtype=jnp.float32)
    ref = _reference(x, w, gamma, beta)

    out_f32 = downsample(x, w, gamma, beta, compute_dtype=jnp.float32)
    jax.block_until_ready(out_f32)
    assert out_f32.shape == (N, C, H // 2, W // 2)
    assert jnp.allclose(out_f32, ref, atol=1e-3, rtol=1e-3)

    out_bf16 = downsample(x, w, gamma, beta)   # bf16 operands / bf16 y (default)
    jax.block_until_ready(out_bf16)
    assert out_bf16.shape == (N, C, H // 2, W // 2)
    assert jnp.allclose(out_bf16, ref, atol=3e-2, rtol=3e-2)

    # ---- Test 2: odd spatial dims exercise reflect-pad borders + tile masks.
    N2, C2, H2, W2 = 2, 8, 17, 17
    x2 = jax.random.normal(kx2, (N2, C2, H2, W2), dtype=jnp.float32)
    bound2 = 1.0 / (C2 * 9) ** 0.5
    w2 = jax.random.uniform(kw2, (C2, C2, 3, 3), jnp.float32, -bound2, bound2)
    gamma2 = jnp.ones((C2,), jnp.float32)
    beta2 = jnp.zeros((C2,), jnp.float32)
    ref2 = _reference(x2, w2, gamma2, beta2)

    out2 = downsample(x2, w2, gamma2, beta2, compute_dtype=jnp.float32)
    jax.block_until_ready(out2)
    assert out2.shape == (N2, C2, 9, 9)
    assert jnp.allclose(out2, ref2, atol=1e-3, rtol=1e-3)

    print("KERNEL_OK")
</pallas_src>

<mosaic_0001>
module attributes {stable_mosaic.version = 11 : i64} {
  func.func @conv_stats_kernel(%arg0: i32, %arg1: i32, %arg2: memref<1x8x9x4xf32, #tpu.memory_space<vmem>>, %arg3: memref<1x1x9x4xf32, #tpu.memory_space<vmem>>, %arg4: memref<1x8x8x4xf32, #tpu.memory_space<vmem>>, %arg5: memref<1x1x8x4xf32, #tpu.memory_space<vmem>>, %arg6: memref<1x8x9x4xf32, #tpu.memory_space<vmem>>, %arg7: memref<1x8x8x4xf32, #tpu.memory_space<vmem>>, %arg8: memref<9x4x128xf32, #tpu.memory_space<vmem>>, %arg9: memref<1x64x128xf32, #tpu.memory_space<vmem>>, %arg10: memref<1x1x8x128xf32, #tpu.memory_space<vmem>>) attributes {dimension_semantics = [#tpu.dimension_semantics<parallel>, #tpu.dimension_semantics<parallel>], iteration_bounds = array<i64: 2, 1>, scalar_prefetch = 0 : i64, scratch_operands = 0 : i64, tpu.core_type = #tpu.core_type<tc>, window_params = [{transform_indices = @transform_0, window_bounds = array<i64: 1, 8, 9, 4>}, {transform_indices = @transform_1, window_bounds = array<i64: 1, 1, 9, 4>}, {transform_indices = @transform_2, window_bounds = array<i64: 1, 8, 8, 4>}, {transform_indices = @transform_3, window_bounds = array<i64: 1, 1, 8, 4>}, {transform_indices = @transform_4, window_bounds = array<i64: 1, 8, 9, 4>}, {transform_indices = @transform_5, window_bounds = array<i64: 1, 8, 8, 4>}, {pipeline_mode = #tpu.pipeline_mode<synchronous>, transform_indices = @transform_6, window_bounds = array<i64: 9, 4, 128>}, {transform_indices = @transform_7, window_bounds = array<i64: 1, 64, 128>}, {transform_indices = @transform_8, window_bounds = array<i64: 1, 1, 8, 128>}]} {
    %c0 = arith.constant 0 : index
    %c0_0 = arith.constant 0 : index
    %c0_1 = arith.constant 0 : index
    %c0_2 = arith.constant 0 : index
    %0 = vector.load %arg2[%c0, %c0_0, %c0_1, %c0_2] : memref<1x8x9x4xf32, #tpu.memory_space<vmem>>, vector<1x8x9x4xf32>
    %1 = vector.shape_cast %0 : vector<1x8x9x4xf32> to vector<8x9x4xf32>
    %c0_3 = arith.constant 0 : index
    %c0_4 = arith.constant 0 : index
    %c0_5 = arith.constant 0 : index
    %c0_6 = arith.constant 0 : index
    %2 = vector.load %arg4[%c0_3, %c0_4, %c0_5, %c0_6] : memref<1x8x8x4xf32, #tpu.memory_space<vmem>>, vector<1x8x8x4xf32>
    %3 = vector.shape_cast %2 : vector<1x8x8x4xf32> to vector<8x8x4xf32>
    %c0_7 = arith.constant 0 : index
    %c0_8 = arith.constant 0 : index
    %c0_9 = arith.constant 0 : index
    %c0_10 = arith.constant 0 : index
    %4 = vector.load %arg6[%c0_7, %c0_8, %c0_9, %c0_10] : memref<1x8x9x4xf32, #tpu.memory_space<vmem>>, vector<1x8x9x4xf32>
    %5 = vector.shape_cast %4 : vector<1x8x9x4xf32> to vector<8x9x4xf32>
    %c0_11 = arith.constant 0 : index
    %c0_12 = arith.constant 0 : index
    %c0_13 = arith.constant 0 : index
    %c0_14 = arith.constant 0 : index
    %6 = vector.load %arg7[%c0_11, %c0_12, %c0_13, %c0_14] : memref<1x8x8x4xf32, #tpu.memory_space<vmem>>, vector<1x8x8x4xf32>
    %7 = vector.shape_cast %6 : vector<1x8x8x4xf32> to vector<8x8x4xf32>
    %8 = vector.extract_strided_slice %1 {offsets = [1, 0, 0], sizes = [7, 9, 4], strides = [1, 1, 1]} : vector<8x9x4xf32> to vector<7x9x4xf32>
    %c0_15 = arith.constant 0 : index
    %c0_16 = arith.constant 0 : index
    %c0_17 = arith.constant 0 : index
    %c0_18 = arith.constant 0 : index
    %9 = vector.load %arg3[%c0_15, %c0_16, %c0_17, %c0_18] : memref<1x1x9x4xf32, #tpu.memory_space<vmem>>, vector<1x1x9x4xf32>
    %10 = vector.shape_cast %9 : vector<1x1x9x4xf32> to vector<1x9x4xf32>
    %11 = tpu.concatenate %8, %10 in 0 : vector<7x9x4xf32>, vector<1x9x4xf32> -> vector<8x9x4xf32>
    %12 = vector.extract_strided_slice %3 {offsets = [1, 0, 0], sizes = [7, 8, 4], strides = [1, 1, 1]} : vector<8x8x4xf32> to vector<7x8x4xf32>
    %c0_19 = arith.constant 0 : index
    %c0_20 = arith.constant 0 : index
    %c0_21 = arith.constant 0 : index
    %c0_22 = arith.constant 0 : index
    %13 = vector.load %arg5[%c0_19, %c0_20, %c0_21, %c0_22] : memref<1x1x8x4xf32, #tpu.memory_space<vmem>>, vector<1x1x8x4xf32>
    %14 = vector.shape_cast %13 : vector<1x1x8x4xf32> to vector<1x8x4xf32>
    %15 = tpu.concatenate %12, %14 in 0 : vector<7x8x4xf32>, vector<1x8x4xf32> -> vector<8x8x4xf32>
    %16 = vector.extract_strided_slice %1 {offsets = [0, 0, 0], sizes = [8, 8, 4], strides = [1, 1, 1]} : vector<8x9x4xf32> to vector<8x8x4xf32>
    %17 = vector.extract_strided_slice %1 {offsets = [0, 1, 0], sizes = [8, 8, 4], strides = [1, 1, 1]} : vector<8x9x4xf32> to vector<8x8x4xf32>
    %18 = vector.extract_strided_slice %5 {offsets = [0, 0, 0], sizes = [8, 8, 4], strides = [1, 1, 1]} : vector<8x9x4xf32> to vector<8x8x4xf32>
    %19 = vector.extract_strided_slice %5 {offsets = [0, 1, 0], sizes = [8, 8, 4], strides = [1, 1, 1]} : vector<8x9x4xf32> to vector<8x8x4xf32>
    %20 = vector.extract_strided_slice %11 {offsets = [0, 0, 0], sizes = [8, 8, 4], strides = [1, 1, 1]} : vector<8x9x4xf32> to vector<8x8x4xf32>
    %21 = vector.extract_strided_slice %11 {offsets = [0, 1, 0], sizes = [8, 8, 4], strides = [1, 1, 1]} : vector<8x9x4xf32> to vector<8x8x4xf32>
    %cst = arith.constant 0.000000e+00 : f32
    %22 = vector.broadcast %cst : f32 to vector<64x128xf32>
    %23 = vector.shape_cast %16 : vector<8x8x4xf32> to vector<64x4xf32>
    %c0_23 = arith.constant 0 : index
    %c0_24 = arith.constant 0 : index
    %c0_25 = arith.constant 0 : index
    %24 = vector.load %arg8[%c0_23, %c0_24, %c0_25] : memref<9x4x128xf32, #tpu.memory_space<vmem>>, vector<1x4x128xf32>
    %25 = vector.shape_cast %24 : vector<1x4x128xf32> to vector<4x128xf32>
    %cst_26 = arith.constant dense<0.000000e+00> : vector<64x128xf32>
    %26 = tpu.matmul %23, %25, %cst_26 {dimension_numbers = #tpu.dot_dimension_numbers<[1], [0], [0], [1], [0, 0, 1, 1], [], []>} : vector<64x4xf32>, vector<4x128xf32>, vector<64x128xf32> -> vector<64x128xf32>
    %27 = arith.addf %22, %26 : vector<64x128xf32>
    %28 = vector.shape_cast %3 : vector<8x8x4xf32> to vector<64x4xf32>
    %c1 = arith.constant 1 : index
    %c0_27 = arith.constant 0 : index
    %c0_28 = arith.constant 0 : index
    %29 = vector.load %arg8[%c1, %c0_27, %c0_28] : memref<9x4x128xf32, #tpu.memory_space<vmem>>, vector<1x4x128xf32>
    %30 = vector.shape_cast %29 : vector<1x4x128xf32> to vector<4x128xf32>
    %cst_29 = arith.constant dense<0.000000e+00> : vector<64x128xf32>
    %31 = tpu.matmul %28, %30, %cst_29 {dimension_numbers = #tpu.dot_dimension_numbers<[1], [0], [0], [1], [0, 0, 1, 1], [], []>} : vector<64x4xf32>, vector<4x128xf32>, vector<64x128xf32> -> vector<64x128xf32>
    %32 = arith.addf %27, %31 : vector<64x128xf32>
    %33 = vector.shape_cast %17 : vector<8x8x4xf32> to vector<64x4xf32>
    %c2 = arith.constant 2 : index
    %c0_30 = arith.constant 0 : index
    %c0_31 = arith.constant 0 : index
    %34 = vector.load %arg8[%c2, %c0_30, %c0_31] : memref<9x4x128xf32, #tpu.memory_space<vmem>>, vector<1x4x128xf32>
    %35 = vector.shape_cast %34 : vector<1x4x128xf32> to vector<4x128xf32>
    %cst_32 = arith.constant dense<0.000000e+00> : vector<64x128xf32>
    %36 = tpu.matmul %33, %35, %cst_32 {dimension_numbers = #tpu.dot_dimension_numbers<[1], [0], [0], [1], [0, 0, 1, 1], [], []>} : vector<64x4xf32>, vector<4x128xf32>, vector<64x128xf32> -> vector<64x128xf32>
    %37 = arith.addf %32, %36 : vector<64x128xf32>
    %38 = vector.shape_cast %18 : vector<8x8x4xf32> to vector<64x4xf32>
    %c3 = arith.constant 3 : index
    %c0_33 = arith.constant 0 : index
    %c0_34 = arith.constant 0 : index
    %39 = vector.load %arg8[%c3, %c0_33, %c0_34] : memref<9x4x128xf32, #tpu.memory_space<vmem>>, vector<1x4x128xf32>
    %40 = vector.shape_cast %39 : vector<1x4x128xf32> to vector<4x128xf32>
    %cst_35 = arith.constant dense<0.000000e+00> : vector<64x128xf32>
    %41 = tpu.matmul %38, %40, %cst_35 {dimension_numbers = #tpu.dot_dimension_numbers<[1], [0], [0], [1], [0, 0, 1, 1], [], []>} : vector<64x4xf32>, vector<4x128xf32>, vector<64x128xf32> -> vector<64x128xf32>
    %42 = arith.addf %37, %41 : vector<64x128xf32>
    %43 = vector.shape_cast %7 : vector<8x8x4xf32> to vector<64x4xf32>
    %c4 = arith.constant 4 : index
    %c0_36 = arith.constant 0 : index
    %c0_37 = arith.constant 0 : index
    %44 = vector.load %arg8[%c4, %c0_36, %c0_37] : memref<9x4x128xf32, #tpu.memory_space<vmem>>, vector<1x4x128xf32>
    %45 = vector.shape_cast %44 : vector<1x4x128xf32> to vector<4x128xf32>
    %cst_38 = arith.constant dense<0.000000e+00> : vector<64x128xf32>
    %46 = tpu.matmul %43, %45, %cst_38 {dimension_numbers = #tpu.dot_dimension_numbers<[1], [0], [0], [1], [0, 0, 1, 1], [], []>} : vector<64x4xf32>, vector<4x128xf32>, vector<64x128xf32> -> vector<64x128xf32>
    %47 = arith.addf %42, %46 : vector<64x128xf32>
    %48 = vector.shape_cast %19 : vector<8x8x4xf32> to vector<64x4xf32>
    %c5 = arith.constant 5 : index
    %c0_39 = arith.constant 0 : index
    %c0_40 = arith.constant 0 : index
    %49 = vector.load %arg8[%c5, %c0_39, %c0_40] : memref<9x4x128xf32, #tpu.memory_space<vmem>>, vector<1x4x128xf32>
    %50 = vector.shape_cast %49 : vector<1x4x128xf32> to vector<4x128xf32>
    %cst_41 = arith.constant dense<0.000000e+00> : vector<64x128xf32>
    %51 = tpu.matmul %48, %50, %cst_41 {dimension_numbers = #tpu.dot_dimension_numbers<[1], [0], [0], [1], [0, 0, 1, 1], [], []>} : vector<64x4xf32>, vector<4x128xf32>, vector<64x128xf32> -> vector<64x128xf32>
    %52 = arith.addf %47, %51 : vector<64x128xf32>
    %53 = vector.shape_cast %20 : vector<8x8x4xf32> to vector<64x4xf32>
    %c6 = arith.constant 6 : index
    %c0_42 = arith.constant 0 : index
    %c0_43 = arith.constant 0 : index
    %54 = vector.load %arg8[%c6, %c0_42, %c0_43] : memref<9x4x128xf32, #tpu.memory_space<vmem>>, vector<1x4x128xf32>
    %55 = vector.shape_cast %54 : vector<1x4x128xf32> to vector<4x128xf32>
    %cst_44 = arith.constant dense<0.000000e+00> : vector<64x128xf32>
    %56 = tpu.matmul %53, %55, %cst_44 {dimension_numbers = #tpu.dot_dimension_numbers<[1], [0], [0], [1], [0, 0, 1, 1], [], []>} : vector<64x4xf32>, vector<4x128xf32>, vector<64x128xf32> -> vector<64x128xf32>
    %57 = arith.addf %52, %56 : vector<64x128xf32>
    %58 = vector.shape_cast %15 : vector<8x8x4xf32> to vector<64x4xf32>
    %c7 = arith.constant 7 : index
    %c0_45 = arith.constant 0 : index
    %c0_46 = arith.constant 0 : index
    %59 = vector.load %arg8[%c7, %c0_45, %c0_46] : memref<9x4x128xf32, #tpu.memory_space<vmem>>, vector<1x4x128xf32>
    %60 = vector.shape_cast %59 : vector<1x4x128xf32> to vector<4x128xf32>
    %cst_47 = arith.constant dense<0.000000e+00> : vector<64x128xf32>
    %61 = tpu.matmul %58, %60, %cst_47 {dimension_numbers = #tpu.dot_dimension_numbers<[1], [0], [0], [1], [0, 0, 1, 1], [], []>} : vector<64x4xf32>, vector<4x128xf32>, vector<64x128xf32> -> vector<64x128xf32>
    %62 = arith.addf %57, %61 : vector<64x128xf32>
    %63 = vector.shape_cast %21 : vector<8x8x4xf32> to vector<64x4xf32>
    %c8 = arith.constant 8 : index
    %c0_48 = arith.constant 0 : index
    %c0_49 = arith.constant 0 : index
    %64 = vector.load %arg8[%c8, %c0_48, %c0_49] : memref<9x4x128xf32, #tpu.memory_space<vmem>>, vector<1x4x128xf32>
    %65 = vector.shape_cast %64 : vector<1x4x128xf32> to vector<4x128xf32>
    %cst_50 = arith.constant dense<0.000000e+00> : vector<64x128xf32>
    %66 = tpu.matmul %63, %65, %cst_50 {dimension_numbers = #tpu.dot_dimension_numbers<[1], [0], [0], [1], [0, 0, 1, 1], [], []>} : vector<64x4xf32>, vector<4x128xf32>, vector<64x128xf32> -> vector<64x128xf32>
    %67 = arith.addf %62, %66 : vector<64x128xf32>
    %68 = vector.shape_cast %67 : vector<64x128xf32> to vector<1x64x128xf32>
    %c0_51 = arith.constant 0 : index
    %c0_52 = arith.constant 0 : index
    %c0_53 = arith.constant 0 : index
    %69 = vector.load %arg9[%c0_51, %c0_52, %c0_53] : memref<1x64x128xf32, #tpu.memory_space<vmem>>, vector<1x64x128xf32>
    tpu.vector_store %arg9[%c0_51, %c0_52, %c0_53], %68 {strides = array<i32>} : memref<1x64x128xf32, #tpu.memory_space<vmem>>, vector<1x64x128xf32>,
    %c8_i32 = arith.constant 8 : i32
    %70 = arith.muli %arg1, %c8_i32 : i32
    %c8_i32_54 = arith.constant 8 : i32
    %71 = arith.subi %c8_i32_54, %70 : i32
    %c0_i32 = arith.constant 0 : i32
    %c8_i32_55 = arith.constant 8 : i32
    %72 = arith.maxsi %c0_i32, %71 : i32
    %73 = arith.minsi %c8_i32_55, %72 : i32
    %74 = tpu.iota {dimensions = array<i32: 0>} : vector<8x8x1xi32>
    %75 = tpu.iota {dimensions = array<i32: 1>} : vector<8x8x1xi32>
    %76 = vector.broadcast %73 : i32 to vector<8x8x1xi32>
    %77 = arith.cmpi slt, %74, %76 : vector<8x8x1xi32>
    %c8_i32_56 = arith.constant 8 : i32
    %78 = vector.broadcast %c8_i32_56 : i32 to vector<8x8x1xi32>
    %79 = arith.cmpi slt, %75, %78 : vector<8x8x1xi32>
    %80 = arith.andi %77, %79 : vector<8x8x1xi1>
    %81 = vector.shape_cast %80 : vector<8x8x1xi1> to vector<64x1xi1>
    %cst_57 = arith.constant 0.000000e+00 : f32
    %82 = vector.shape_cast %81 : vector<64x1xi1> to vector<64x1xi1>
    %83 = vector.broadcast %82 : vector<64x1xi1> to vector<64x128xi1>
    %84 = vector.broadcast %cst_57 : f32 to vector<64x128xf32>
    %85 = arith.select %83, %67, %84 : vector<64x128xi1>, vector<64x128xf32>
    %cst_58 = arith.constant dense<0.000000e+00> : vector<128xf32>
    %86 = vector.multi_reduction <add>, %85, %cst_58 [0] : vector<64x128xf32> to vector<128xf32>
    %87 = vector.shape_cast %86 : vector<128xf32> to vector<1x128xf32>
    %88 = arith.mulf %85, %85 : vector<64x128xf32>
    %cst_59 = arith.constant dense<0.000000e+00> : vector<128xf32>
    %89 = vector.multi_reduction <add>, %88, %cst_59 [0] : vector<64x128xf32> to vector<128xf32>
    %90 = vector.shape_cast %89 : vector<128xf32> to vector<1x128xf32>
    %cst_60 = arith.constant 0.000000e+00 : f32
    %91 = vector.broadcast %cst_60 : f32 to vector<6x128xf32>
    %92 = tpu.concatenate %87, %90, %91 in 0 : vector<1x128xf32>, vector<1x128xf32>, vector<6x128xf32> -> vector<8x128xf32>
    %93 = vector.shape_cast %92 : vector<8x128xf32> to vector<1x1x8x128xf32>
    %c0_61 = arith.constant 0 : index
    %c0_62 = arith.constant 0 : index
    %c0_63 = arith.constant 0 : index
    %c0_64 = arith.constant 0 : index
    %94 = vector.load %arg10[%c0_61, %c0_62, %c0_63, %c0_64] : memref<1x1x8x128xf32, #tpu.memory_space<vmem>>, vector<1x1x8x128xf32>
    tpu.vector_store %arg10[%c0_61, %c0_62, %c0_63, %c0_64], %93 {strides = array<i32>} : memref<1x1x8x128xf32, #tpu.memory_space<vmem>>, vector<1x1x8x128xf32>,
    return
  }
  func.func @transform_0(%arg0: i32, %arg1: i32) -> (i32, i32, i32, i32) {
    %c0_i32 = arith.constant 0 : i32
    %c0_i32_0 = arith.constant 0 : i32
    %c0_i32_1 = arith.constant 0 : i32
    return %arg0, %arg1, %c0_i32, %c0_i32_0 : i32, i32, i32, i32
  }
  func.func @transform_1(%arg0: i32, %arg1: i32) -> (i32, i32, i32, i32) {
    %c1_i32 = arith.constant 1 : i32
    %0 = arith.addi %arg1, %c1_i32 : i32
    %c8_i32 = arith.constant 8 : i32
    %1 = arith.muli %0, %c8_i32 : i32
    %c0_i32 = arith.constant 0 : i32
    %c0_i32_0 = arith.constant 0 : i32
    %c0_i32_1 = arith.constant 0 : i32
    return %arg0, %1, %c0_i32, %c0_i32_0 : i32, i32, i32, i32
  }
  func.func @transform_2(%arg0: i32, %arg1: i32) -> (i32, i32, i32, i32) {
    %c0_i32 = arith.constant 0 : i32
    %c0_i32_0 = arith.constant 0 : i32
    %c0_i32_1 = arith.constant 0 : i32
    return %arg0, %arg1, %c0_i32, %c0_i32_0 : i32, i32, i32, i32
  }
  func.func @transform_3(%arg0: i32, %arg1: i32) -> (i32, i32, i32, i32) {
    %c1_i32 = arith.constant 1 : i32
    %0 = arith.addi %arg1, %c1_i32 : i32
    %c8_i32 = arith.constant 8 : i32
    %1 = arith.muli %0, %c8_i32 : i32
    %c0_i32 = arith.constant 0 : i32
    %c0_i32_0 = arith.constant 0 : i32
    %c0_i32_1 = arith.constant 0 : i32
    return %arg0, %1, %c0_i32, %c0_i32_0 : i32, i32, i32, i32
  }
  func.func @transform_4(%arg0: i32, %arg1: i32) -> (i32, i32, i32, i32) {
    %c0_i32 = arith.constant 0 : i32
    %c0_i32_0 = arith.constant 0 : i32
    %c0_i32_1 = arith.constant 0 : i32
    return %arg0, %arg1, %c0_i32, %c0_i32_0 : i32, i32, i32, i32
  }
  func.func @transform_5(%arg0: i32, %arg1: i32) -> (i32, i32, i32, i32) {
    %c0_i32 = arith.constant 0 : i32
    %c0_i32_0 = arith.constant 0 : i32
    %c0_i32_1 = arith.constant 0 : i32
    return %arg0, %arg1, %c0_i32, %c0_i32_0 : i32, i32, i32, i32
  }
  func.func @transform_6(%arg0: i32, %arg1: i32) -> (i32, i32, i32) {
    %c0_i32 = arith.constant 0 : i32
    %c0_i32_0 = arith.constant 0 : i32
    %c0_i32_1 = arith.constant 0 : i32
    %c0_i32_2 = arith.constant 0 : i32
    return %c0_i32, %c0_i32_0, %c0_i32_1 : i32, i32, i32
  }
  func.func @transform_7(%arg0: i32, %arg1: i32) -> (i32, i32, i32) {
    %c0_i32 = arith.constant 0 : i32
    %c0_i32_0 = arith.constant 0 : i32
    return %arg0, %arg1, %c0_i32 : i32, i32, i32
  }
  func.func @transform_8(%arg0: i32, %arg1: i32) -> (i32, i32, i32, i32) {
    %c0_i32 = arith.constant 0 : i32
    %c0_i32_0 = arith.constant 0 : i32
    %c0_i32_1 = arith.constant 0 : i32
    return %arg0, %arg1, %c0_i32, %c0_i32_0 : i32, i32, i32, i32
  }
}

</mosaic_0001>

<llo_original>
// kernel: tpu_custom_call.1
$region0: #{tpu_custom_call.1}
  #allocation0 [shape = 'u32[]', space=smem, size = 0x4, offset = 0x4, fixed_abs, tag = 'smem constant byte address 0x4 - core index']
  #allocation1 [shape = 'u32[144,128]{1,0:T(1,128)}', space=vmem, size = 0x12000, scoped, tag = 'internal scratch']
  %s0 = inlined_call_operand.vmem [shape: f32[2,9,9,4], index: 0, kind: input, shape index: {}]
  %s1 = inlined_call_operand.vmem [shape: f32[2,9,9,4], index: 1, kind: input, shape index: {}]
  %s2 = inlined_call_operand.vmem [shape: f32[2,9,8,4], index: 2, kind: input, shape index: {}]
  %s3 = inlined_call_operand.vmem [shape: f32[2,9,8,4], index: 3, kind: input, shape index: {}]
  %s4 = inlined_call_operand.vmem [shape: f32[2,8,9,4], index: 4, kind: input, shape index: {}]
  %s5 = inlined_call_operand.vmem [shape: f32[2,8,8,4], index: 5, kind: input, shape index: {}]
  %s6 = inlined_call_operand.vmem [shape: f32[9,4,128], index: 6, kind: input, shape index: {}]
  %s7 = inlined_call_operand.hbm [shape: f32[2,64,128], index: 7, kind: output, shape index: {0}]
  %s8 = inlined_call_operand.hbm [shape: f32[2,1,8,128], index: 8, kind: output, shape index: {1}]
  %9 = xla_tuple %s7, %s8
  %s10 = sld [smem:[#allocation0]]
  $region69: #{tpu_custom_call.1} parent=0
    _
  %s12 = ssub.s32 1, %s10
  %s13 = scalar_select 0, %s12, %s10
  $region1: #{tpu_custom_call.1} parent=0
    #allocation2 [shape = 'u8[65536]{0}', space=vmem, size = 0x10000, scoped, tag = 'output window, operand 0']
    #allocation3 [shape = 's32[2]{0}', space=sflag, size = 0x8, scoped, tag = 'scoped memory for tpu_custom_call.1']
    #allocation4 [shape = 'u8[8192]{0}', space=vmem, size = 0x2000, scoped, tag = 'output window, operand 1']
    #allocation5 [shape = 's32[2]{0}', space=sflag, size = 0x8, scoped, tag = 'scoped memory for tpu_custom_call.1']
    %14 = vsyncpa [#allocation3], 0
    %s15 = scalar_lea.sflag [#allocation3], 1
    %16 = vsyncpa %s15, 0
    %17 = vsyncpa [#allocation5], 0
    %s18 = scalar_lea.sflag [#allocation5], 1
    %19 = vsyncpa %s18, 0
    loop: start=0, step=1, limit=4
    $region2: #{tpu_custom_call.1} parent=1 // loop_pre_header
      _
    $region3: #{tpu_custom_call.1} parent=1 // loop_header
      %s21 = sphi 0, %s25
      %p22 = scmp.ge.s32.totalorder %s21, 4
      %s28 = sphi 0, %s40
      %s29 = sphi 0, %s36
      %s30 = sphi 0, %s28
      %s31 = sphi 0, %s29
      %s32 = sphi 0, %s30
      %s33 = sphi 0, %s31
      %s45 = sphi 0, %s47
      %s48 = sphi 0, %s45
      %s49 = sphi 0, %s48
      %s65 = sphi 0, %s49
      %s77 = sphi 0, %s79
      %s80 = sphi 0, %s77
      %s81 = sphi 0, %s80
      %s97 = sphi 0, %s81
      %s105 = sphi 0, %s107
      %s108 = sphi 0, %s105
      %s109 = sphi 0, %s108
      %s125 = sphi 0, %s109
      %s137 = sphi 0, %s139
      %s140 = sphi 0, %s137
      %s141 = sphi 0, %s140
      %s157 = sphi 0, %s141
      %s165 = sphi 0, %s167
      %s168 = sphi 0, %s165
      %s169 = sphi 0, %s168
      %s185 = sphi 0, %s169
      %s193 = sphi 0, %s195
      %s196 = sphi 0, %s193
      %s197 = sphi 0, %s196
      %s213 = sphi 0, %s197
      %s217 = sphi 0, %s217
      %s219 = sphi 0, %s217
      %s220 = sphi 0, %s219
      %s234 = sphi 0, %s220
      %s242 = sphi 0, %s244
      %s245 = sphi 0, %s242
      %s246 = sphi 0, %s245
      %s262 = sphi 0, %s246
      %s270 = sphi 0, %s272
      %s273 = sphi 0, %s270
      %s274 = sphi 0, %s273
      %s290 = sphi 0, %s274
    $region4: #{tpu_custom_call.1} parent=1 // loop_header_branch
      %24 = sbr.rel (%p22) target = $region8
    $region5: #{tpu_custom_call.1} parent=1 // loop_body
      %s26 = ssub.s32 %s21, 1
      %s27 = ssub.s32 %s21, 2
      %s34 = sadd.s32 1, %s29
      %p35 = scmp.ge.s32.totalorder %s34, 1
      %s36 = scalar_select %p35, 0, %s34
      %s37 = sadd.s32 1, %s28
      %s38 = scalar_select %p35, %s37, %s28
      %p39 = scmp.ge.s32.totalorder %s38, 2
      %s40 = scalar_select %p39, 0, %s38
      %s41 = ssub.s32 %s28, %s40
      %s42 = ssub.s32 %s29, %s36
      %s43 = sor.u32 %s41, %s42
      %p44 = scmp.eq.s32.totalorder %s43, 0
      %s46 = sadd.s32 %s45, 1
      %s47 = scalar_select %p44, %s45, %s46
      %p50 = pneg %p44
      %p51 = scmp.eq.s32.totalorder %s21, 1
      %p52 = por %p50, %p51
      %p53 = scmp.ne.s32.totalorder %s45, %s48
      %p54 = scmp.eq.s32.totalorder %s21, 0
      %p55 = por %p53, %p54
      %p56 = scmp.ne.s32.totalorder %s45, %s48
      %p57 = scmp.eq.s32.totalorder %s26, 1
      %p58 = por %p56, %p57
      %p59 = scmp.ne.s32.totalorder %s48, %s49
      %p60 = scmp.eq.s32.totalorder %s26, 0
      %p61 = por %p59, %p60
      %p62 = scmp.ne.s32.totalorder %s48, %s49
      %p63 = scmp.eq.s32.totalorder %s27, 1
      %p64 = por %p62, %p63
      %p66 = scmp.ne.s32.totalorder %s49, %s65
      %p67 = scmp.eq.s32.totalorder %s27, 0
      %p68 = por %p66, %p67
      %s69 = sadd.s32 %s29, 1
      %s70 = smul.u32 %s69, 8
      %s71 = sadd.s32 %s36, 1
      %s72 = smul.u32 %s71, 8
      %s73 = ssub.s32 %s28, %s40
      %s74 = ssub.s32 %s70, %s72
      %s75 = sor.u32 %s73, %s74
      %p76 = scmp.eq.s32.totalorder %s75, 0
      %s78 = sadd.s32 %s77, 1
      %s79 = scalar_select %p76, %s77, %s78
      %p82 = pneg %p76
      %p83 = scmp.eq.s32.totalorder %s21, 1
      %p84 = por %p82, %p83
      %p85 = scmp.ne.s32.totalorder %s77, %s80
      %p86 = scmp.eq.s32.totalorder %s21, 0
      %p87 = por %p85, %p86
      %p88 = scmp.ne.s32.totalorder %s77, %s80
      %p89 = scmp.eq.s32.totalorder %s26, 1
      %p90 = por %p88, %p89
      %p91 = scmp.ne.s32.totalorder %s80, %s81
      %p92 = scmp.eq.s32.totalorder %s26, 0
      %p93 = por %p91, %p92
      %p94 = scmp.ne.s32.totalorder %s80, %s81
      %p95 = scmp.eq.s32.totalorder %s27, 1
      %p96 = por %p94, %p95
      %p98 = scmp.ne.s32.totalorder %s81, %s97
      %p99 = scmp.eq.s32.totalorder %s27, 0
      %p100 = por %p98, %p99
      %s101 = ssub.s32 %s28, %s40
      %s102 = ssub.s32 %s29, %s36
      %s103 = sor.u32 %s101, %s102
      %p104 = scmp.eq.s32.totalorder %s103, 0
      %s106 = sadd.s32 %s105, 1
      %s107 = scalar_select %p104, %s105, %s106
      %p110 = pneg %p104
      %p111 = scmp.eq.s32.totalorder %s21, 1
      %p112 = por %p110, %p111
      %p113 = scmp.ne.s32.totalorder %s105, %s108
      %p114 = scmp.eq.s32.totalorder %s21, 0
      %p115 = por %p113, %p114
      %p116 = scmp.ne.s32.totalorder %s105, %s108
      %p117 = scmp.eq.s32.totalorder %s26, 1
      %p118 = por %p116, %p117
      %p119 = scmp.ne.s32.totalorder %s108, %s109
      %p120 = scmp.eq.s32.totalorder %s26, 0
      %p121 = por %p119, %p120
      %p122 = scmp.ne.s32.totalorder %s108, %s109
      %p123 = scmp.eq.s32.totalorder %s27, 1
      %p124 = por %p122, %p123
      %p126 = scmp.ne.s32.totalorder %s109, %s125
      %p127 = scmp.eq.s32.totalorder %s27, 0
      %p128 = por %p126, %p127
      %s129 = sadd.s32 %s29, 1
      %s130 = smul.u32 %s129, 8
      %s131 = sadd.s32 %s36, 1
      %s132 = smul.u32 %s131, 8
      %s133 = ssub.s32 %s28, %s40
      %s134 = ssub.s32 %s130, %s132
      %s135 = sor.u32 %s133, %s134
      %p136 = scmp.eq.s32.totalorder %s135, 0
      %s138 = sadd.s32 %s137, 1
      %s139 = scalar_select %p136, %s137, %s138
      %p142 = pneg %p136
      %p143 = scmp.eq.s32.totalorder %s21, 1
      %p144 = por %p142, %p143
      %p145 = scmp.ne.s32.totalorder %s137, %s140
      %p146 = scmp.eq.s32.totalorder %s21, 0
      %p147 = por %p145, %p146
      %p148 = scmp.ne.s32.totalorder %s137, %s140
      %p149 = scmp.eq.s32.totalorder %s26, 1
      %p150 = por %p148, %p149
      %p151 = scmp.ne.s32.totalorder %s140, %s141
      %p152 = scmp.eq.s32.totalorder %s26, 0
      %p153 = por %p151, %p152
      %p154 = scmp.ne.s32.totalorder %s140, %s141
      %p155 = scmp.eq.s32.totalorder %s27, 1
      %p156 = por %p154, %p155
      %p158 = scmp.ne.s32.totalorder %s141, %s157
      %p159 = scmp.eq.s32.totalorder %s27, 0
      %p160 = por %p158, %p159
      %s161 = ssub.s32 %s28, %s40
      %s162 = ssub.s32 %s29, %s36
      %s163 = sor.u32 %s161, %s162
      %p164 = scmp.eq.s32.totalorder %s163, 0
      %s166 = sadd.s32 %s165, 1
      %s167 = scalar_select %p164, %s165, %s166
      %p170 = pneg %p164
      %p171 = scmp.eq.s32.totalorder %s21, 1
      %p172 = por %p170, %p171
      %p173 = scmp.ne.s32.totalorder %s165, %s168
      %p174 = scmp.eq.s32.totalorder %s21, 0
      %p175 = por %p173, %p174
      %p176 = scmp.ne.s32.totalorder %s165, %s168
      %p177 = scmp.eq.s32.totalorder %s26, 1
      %p178 = por %p176, %p177
      %p179 = scmp.ne.s32.totalorder %s168, %s169
      %p180 = scmp.eq.s32.totalorder %s26, 0
      %p181 = por %p179, %p180
      %p182 = scmp.ne.s32.totalorder %s168, %s169
      %p183 = scmp.eq.s32.totalorder %s27, 1
      %p184 = por %p182, %p183
      %p186 = scmp.ne.s32.totalorder %s169, %s185
      %p187 = scmp.eq.s32.totalorder %s27, 0
      %p188 = por %p186, %p187
      %s189 = ssub.s32 %s28, %s40
      %s190 = ssub.s32 %s29, %s36
      %s191 = sor.u32 %s189, %s190
      %p192 = scmp.eq.s32.totalorder %s191, 0
      %s194 = sadd.s32 %s193, 1
      %s195 = scalar_select %p192, %s193, %s194
      %p198 = pneg %p192
      %p199 = scmp.eq.s32.totalorder %s21, 1
      %p200 = por %p198, %p199
      %p201 = scmp.ne.s32.totalorder %s193, %s196
      %p202 = scmp.eq.s32.totalorder %s21, 0
      %p203 = por %p201, %p202
      %p204 = scmp.ne.s32.totalorder %s193, %s196
      %p205 = scmp.eq.s32.totalorder %s26, 1
      %p206 = por %p204, %p205
      %p207 = scmp.ne.s32.totalorder %s196, %s197
      %p208 = scmp.eq.s32.totalorder %s26, 0
      %p209 = por %p207, %p208
      %p210 = scmp.ne.s32.totalorder %s196, %s197
      %p211 = scmp.eq.s32.totalorder %s27, 1
      %p212 = por %p210, %p211
      %p214 = scmp.ne.s32.totalorder %s197, %s213
      %p215 = scmp.eq.s32.totalorder %s27, 0
      %p216 = por %p214, %p215
      %s218 = sadd.s32 %s217, 1
      %p221 = scmp.eq.s32.totalorder %s21, 1
      %p222 = scmp.ne.s32.totalorder %s217, %s219
      %p223 = scmp.eq.s32.totalorder %s21, 0
      %p224 = por %p222, %p223
      %p225 = scmp.ne.s32.totalorder %s217, %s219
      %p226 = scmp.eq.s32.totalorder %s26, 1
      %p227 = por %p225, %p226
      %p228 = scmp.ne.s32.totalorder %s219, %s220
      %p229 = scmp.eq.s32.totalorder %s26, 0
      %p230 = por %p228, %p229
      %p231 = scmp.ne.s32.totalorder %s219, %s220
      %p232 = scmp.eq.s32.totalorder %s27, 1
      %p233 = por %p231, %p232
      %p235 = scmp.ne.s32.totalorder %s220, %s234
      %p236 = scmp.eq.s32.totalorder %s27, 0
      %p237 = por %p235, %p236
      %s238 = ssub.s32 %s28, %s40
      %s239 = ssub.s32 %s29, %s36
      %s240 = sor.u32 %s238, %s239
      %p241 = scmp.eq.s32.totalorder %s240, 0
      %s243 = sadd.s32 %s242, 1
      %s244 = scalar_select %p241, %s242, %s243
      %p247 = pneg %p241
      %p248 = scmp.eq.s32.totalorder %s21, 1
      %p249 = por %p247, %p248
      %p250 = scmp.ne.s32.totalorder %s242, %s245
      %p251 = scmp.eq.s32.totalorder %s21, 0
      %p252 = por %p250, %p251
      %p253 = scmp.ne.s32.totalorder %s242, %s245
      %p254 = scmp.eq.s32.totalorder %s26, 1
      %p255 = por %p253, %p254
      %p256 = scmp.ne.s32.totalorder %s245, %s246
      %p257 = scmp.eq.s32.totalorder %s26, 0
      %p258 = por %p256, %p257
      %p259 = scmp.ne.s32.totalorder %s245, %s246
      %p260 = scmp.eq.s32.totalorder %s27, 1
      %p261 = por %p259, %p260
      %p263 = scmp.ne.s32.totalorder %s246, %s262
      %p264 = scmp.eq.s32.totalorder %s27, 0
      %p265 = por %p263, %p264
      %s266 = ssub.s32 %s28, %s40
      %s267 = ssub.s32 %s29, %s36
      %s268 = sor.u32 %s266, %s267
      %p269 = scmp.eq.s32.totalorder %s268, 0
      %s271 = sadd.s32 %s270, 1
      %s272 = scalar_select %p269, %s270, %s271
      %p275 = pneg %p269
      %p276 = scmp.eq.s32.totalorder %s21, 1
      %p277 = por %p275, %p276
      %p278 = scmp.ne.s32.totalorder %s270, %s273
      %p279 = scmp.eq.s32.totalorder %s21, 0
      %p280 = por %p278, %p279
      %p281 = scmp.ne.s32.totalorder %s270, %s273
      %p282 = scmp.eq.s32.totalorder %s26, 1
      %p283 = por %p281, %p282
      %p284 = scmp.ne.s32.totalorder %s273, %s274
      %p285 = scmp.eq.s32.totalorder %s26, 0
      %p286 = por %p284, %p285
      %p287 = scmp.ne.s32.totalorder %s273, %s274
      %p288 = scmp.eq.s32.totalorder %s27, 1
      %p289 = por %p287, %p288
      %p291 = scmp.ne.s32.totalorder %s274, %s290
      %p292 = scmp.eq.s32.totalorder %s27, 0
      %p293 = por %p291, %p292
      %p294 = scmp.le.s32.totalorder 1, %s21
      %p295 = scmp.lt.s32.totalorder %s21, 3
      %p296 = pnand %p294, %p295
      %p297 = pneg %p296
      // Predicated region
      $region9: #{tpu_custom_call.1} parent=5 // pred_check
        _
      $region10: #{tpu_custom_call.1} parent=5 // pred_check_branch
        %299 = sbr.rel (%p296) target = $region12
      $region11: #{tpu_custom_call.1} parent=5 // pred_region
        %s300 = ssub.s32 %s21, 1
        // Predicated region
        $region13: #{tpu_custom_call.1} parent=11 // pred_check
          %p301 = pneg %p230
        $region14: #{tpu_custom_call.1} parent=11 // pred_check_branch
          %303 = sbr.rel (%p301) target = $region16
        $region15: #{tpu_custom_call.1} parent=11 // pred_region
          _
        $region16: #{tpu_custom_call.1} parent=11 // pred_fallthru
          _
      $region12: #{tpu_custom_call.1} parent=5 // pred_fallthru
        _
      %p304 = scmp.lt.s32.totalorder %s21, 2
      // Predicated region
      $region17: #{tpu_custom_call.1} parent=5 // pred_check
        %p305 = pneg %p304
      $region18: #{tpu_custom_call.1} parent=5 // pred_check_branch
        %307 = sbr.rel (%p305) target = $region20
      $region19: #{tpu_custom_call.1} parent=5 // pred_region
        // Predicated region
        $region21: #{tpu_custom_call.1} parent=19 // pred_check
          %p308 = pneg %p55
        $region22: #{tpu_custom_call.1} parent=19 // pred_check_branch
          %310 = sbr.rel (%p308) target = $region24
        $region23: #{tpu_custom_call.1} parent=19 // pred_region
          %s311 = smul.u32 8, %s29
          %s312 = ssub.s32 9, %s311
          %p313 = scmp.lt.s32.totalorder %s312, 8
          %s314 = scalar_select %p313, %s312, 8
          %s315 = smul.u32 128, %s314
          %s316 = smul.u32 %s315, 2
          %p317 = scmp.lt.s32.totalorder %s28, 1
          %s318 = scalar_select %p317, %s28, 1
          %p319 = scmp.lt.s32.totalorder %s311, 8
          %s320 = scalar_select %p319, %s311, 8
          %s321 = smul.addr %s320, 2
          %s322 = smul.addr %s318, 18
          %s323 = sadd.s32 %s321, %s322
          %s324 = smul.addr %s323, 8
          %s325 = scalar_lea.vmem %s0, %s324
          %s326 = smul.u32 8, %s29
          %s327 = ssub.s32 9, %s326
          %p328 = scmp.lt.s32.totalorder %s327, 8
          %s329 = scalar_select %p328, %s327, 8
          %s330 = smul.u32 128, %s329
          %s331 = smul.u32 %s330, 2
        $region24: #{tpu_custom_call.1} parent=19 // pred_fallthru
          _
        // Predicated region
        $region25: #{tpu_custom_call.1} parent=19 // pred_check
          %p332 = pneg %p87
        $region26: #{tpu_custom_call.1} parent=19 // pred_check_branch
          %334 = sbr.rel (%p332) target = $region28
        $region27: #{tpu_custom_call.1} parent=19 // pred_region
          %s335 = sadd.s32 %s29, 1
          %s336 = smul.u32 %s335, 8
          %p337 = scmp.lt.s32.totalorder %s28, 1
          %s338 = scalar_select %p337, %s28, 1
          %p339 = scmp.lt.s32.totalorder %s336, 8
          %s340 = scalar_select %p339, %s336, 8
          %s341 = smul.addr %s340, 2
          %s342 = smul.addr %s338, 18
          %s343 = sadd.s32 %s341, %s342
          %s344 = smul.addr %s343, 8
          %s345 = scalar_lea.vmem %s1, %s344
          %s346 = sadd.s32 %s29, 1
          %s347 = smul.u32 %s346, 8
        $region28: #{tpu_custom_call.1} parent=19 // pred_fallthru
          _
        // Predicated region
        $region29: #{tpu_custom_call.1} parent=19 // pred_check
          %p348 = pneg %p115
        $region30: #{tpu_custom_call.1} parent=19 // pred_check_branch
          %350 = sbr.rel (%p348) target = $region32
        $region31: #{tpu_custom_call.1} parent=19 // pred_region
          %s351 = smul.u32 8, %s29
          %s352 = ssub.s32 9, %s351
          %p353 = scmp.lt.s32.totalorder %s352, 8
          %s354 = scalar_select %p353, %s352, 8
          %s355 = smul.u32 128, %s354
          %p356 = scmp.lt.s32.totalorder %s28, 1
          %s357 = scalar_select %p356, %s28, 1
          %p358 = scmp.lt.s32.totalorder %s351, 8
          %s359 = scalar_select %p358, %s351, 8
          %s360 = smul.addr %s357, 9
          %s361 = sadd.s32 %s359, %s360
          %s362 = smul.addr %s361, 8
          %s363 = scalar_lea.vmem %s2, %s362
          %s364 = smul.u32 8, %s29
          %s365 = ssub.s32 9, %s364
          %p366 = scmp.lt.s32.totalorder %s365, 8
          %s367 = scalar_select %p366, %s365, 8
          %s368 = smul.u32 128, %s367
        $region32: #{tpu_custom_call.1} parent=19 // pred_fallthru
          _
        // Predicated region
        $region33: #{tpu_custom_call.1} parent=19 // pred_check
          %p369 = pneg %p147
        $region34: #{tpu_custom_call.1} parent=19 // pred_check_branch
          %371 = sbr.rel (%p369) target = $region36
        $region35: #{tpu_custom_call.1} parent=19 // pred_region
          %s372 = sadd.s32 %s29, 1
          %s373 = smul.u32 %s372, 8
          %p374 = scmp.lt.s32.totalorder %s28, 1
          %s375 = scalar_select %p374, %s28, 1
          %p376 = scmp.lt.s32.totalorder %s373, 8
          %s377 = scalar_select %p376, %s373, 8
          %s378 = smul.addr %s375, 9
          %s379 = sadd.s32 %s377, %s378
          %s380 = smul.addr %s379, 8
          %s381 = scalar_lea.vmem %s3, %s380
          %s382 = sadd.s32 %s29, 1
          %s383 = smul.u32 %s382, 8
        $region36: #{tpu_custom_call.1} parent=19 // pred_fallthru
          _
        // Predicated region
        $region37: #{tpu_custom_call.1} parent=19 // pred_check
          %p384 = pneg %p175
        $region38: #{tpu_custom_call.1} parent=19 // pred_check_branch
          %386 = sbr.rel (%p384) target = $region40
        $region39: #{tpu_custom_call.1} parent=19 // pred_region
          %s387 = smul.u32 8, %s29
          %p388 = scmp.lt.s32.totalorder %s28, 1
          %s389 = scalar_select %p388, %s28, 1
          %p390 = scmp.lt.s32.totalorder %s387, 7
          %s391 = scalar_select %p390, %s387, 7
          %s392 = smul.addr %s391, 2
          %s393 = smul.addr %s389, 16
          %s394 = sadd.s32 %s392, %s393
          %s395 = smul.addr %s394, 8
          %s396 = scalar_lea.vmem %s4, %s395
          %s397 = smul.u32 8, %s29
        $region40: #{tpu_custom_call.1} parent=19 // pred_fallthru
          _
        // Predicated region
        $region41: #{tpu_custom_call.1} parent=19 // pred_check
          %p398 = pneg %p203
        $region42: #{tpu_custom_call.1} parent=19 // pred_check_branch
          %400 = sbr.rel (%p398) target = $region44
        $region43: #{tpu_custom_call.1} parent=19 // pred_region
          %s401 = smul.u32 8, %s29
          %p402 = scmp.lt.s32.totalorder %s28, 1
          %s403 = scalar_select %p402, %s28, 1
          %p404 = scmp.lt.s32.totalorder %s401, 7
          %s405 = scalar_select %p404, %s401, 7
          %s406 = smul.addr %s403, 8
          %s407 = sadd.s32 %s405, %s406
          %s408 = smul.addr %s407, 8
          %s409 = scalar_lea.vmem %s5, %s408
          %s410 = smul.u32 8, %s29
        $region44: #{tpu_custom_call.1} parent=19 // pred_fallthru
          _
      $region20: #{tpu_custom_call.1} parent=5 // pred_fallthru
        _
      %p411 = scmp.le.s32.totalorder 1, %s21
      %p412 = scmp.lt.s32.totalorder %s21, 3
      %p413 = pnand %p411, %p412
      %p414 = pneg %p413
      // Predicated region
      $region45: #{tpu_custom_call.1} parent=5 // pred_check
        _
      $region46: #{tpu_custom_call.1} parent=5 // pred_check_branch
        %416 = sbr.rel (%p413) target = $region48
      $region47: #{tpu_custom_call.1} parent=5 // pred_region
        %s417 = ssub.s32 %s21, 1
        %s418 = smul.u32 8, %s31
        %s419 = ssub.s32 9, %s418
        %p420 = scmp.lt.s32.totalorder %s419, 8
        %s421 = scalar_select %p420, %s419, 8
        %s422 = smul.u32 128, %s421
        %s423 = smul.u32 %s422, 2
        %p424 = scmp.lt.s32.totalorder %s30, 1
        %s425 = scalar_select %p424, %s30, 1
        %p426 = scmp.lt.s32.totalorder %s418, 8
        %s427 = scalar_select %p426, %s418, 8
        %s428 = smul.addr %s427, 2
        %s429 = smul.addr %s425, 18
        %s430 = sadd.s32 %s428, %s429
        %s431 = smul.addr %s430, 8
        %s432 = scalar_lea.vmem %s0, %s431
        %p433 = pneg %p61
        %p434 = pneg %p58
        %s435 = sadd.s32 %s31, 1
        %s436 = smul.u32 %s435, 8
        %p437 = scmp.lt.s32.totalorder %s30, 1
        %s438 = scalar_select %p437, %s30, 1
        %p439 = scmp.lt.s32.totalorder %s436, 8
        %s440 = scalar_select %p439, %s436, 8
        %s441 = smul.addr %s440, 2
        %s442 = smul.addr %s438, 18
        %s443 = sadd.s32 %s441, %s442
        %s444 = smul.addr %s443, 8
        %s445 = scalar_lea.vmem %s1, %s444
        %p446 = pneg %p93
        %p447 = pneg %p90
        %s448 = smul.u32 8, %s31
        %s449 = ssub.s32 9, %s448
        %p450 = scmp.lt.s32.totalorder %s449, 8
        %s451 = scalar_select %p450, %s449, 8
        %s452 = smul.u32 128, %s451
        %p453 = scmp.lt.s32.totalorder %s30, 1
        %s454 = scalar_select %p453, %s30, 1
        %p455 = scmp.lt.s32.totalorder %s448, 8
        %s456 = scalar_select %p455, %s448, 8
        %s457 = smul.addr %s454, 9
        %s458 = sadd.s32 %s456, %s457
        %s459 = smul.addr %s458, 8
        %s460 = scalar_lea.vmem %s2, %s459
        %p461 = pneg %p121
        %p462 = pneg %p118
        %s463 = sadd.s32 %s31, 1
        %s464 = smul.u32 %s463, 8
        %p465 = scmp.lt.s32.totalorder %s30, 1
        %s466 = scalar_select %p465, %s30, 1
        %p467 = scmp.lt.s32.totalorder %s464, 8
        %s468 = scalar_select %p467, %s464, 8
        %s469 = smul.addr %s466, 9
        %s470 = sadd.s32 %s468, %s469
        %s471 = smul.addr %s470, 8
        %s472 = scalar_lea.vmem %s3, %s471
        %p473 = pneg %p153
        %p474 = pneg %p150
        %s475 = smul.u32 8, %s31
        %p476 = scmp.lt.s32.totalorder %s30, 1
        %s477 = scalar_select %p476, %s30, 1
        %p478 = scmp.lt.s32.totalorder %s475, 7
        %s479 = scalar_select %p478, %s475, 7
        %s480 = smul.addr %s479, 2
        %s481 = smul.addr %s477, 16
        %s482 = sadd.s32 %s480, %s481
        %s483 = smul.addr %s482, 8
        %s484 = scalar_lea.vmem %s4, %s483
        %p485 = pneg %p181
        %p486 = pneg %p178
        %s487 = smul.u32 8, %s31
        %p488 = scmp.lt.s32.totalorder %s30, 1
        %s489 = scalar_select %p488, %s30, 1
        %p490 = scmp.lt.s32.totalorder %s487, 7
        %s491 = scalar_select %p490, %s487, 7
        %s492 = smul.addr %s489, 8
        %s493 = sadd.s32 %s491, %s492
        %s494 = smul.addr %s493, 8
        %s495 = scalar_lea.vmem %s5, %s494
        %p496 = pneg %p209
        %p497 = pneg %p206
        %p498 = pneg %p230
        %p499 = pneg %p227
        %p500 = pneg %p258
        %p501 = pneg %p255
        %s502 = sand.u32 %s245, 1
        %s503 = scalar_lea.sflag [#allocation3], %s502
        %s504 = sand.u32 %s245, 1
        %s505 = smul.addr %s504, 64
        %s506 = scalar_lea.vmem [#allocation2], %s505
        %p507 = pneg %p286
        %p508 = pneg %p283
        %s509 = sand.u32 %s273, 1
        %s510 = scalar_lea.sflag [#allocation5], %s509
        %s511 = sand.u32 %s273, 1
        %s512 = smul.addr %s511, 8
        %s513 = scalar_lea.vmem [#allocation4], %s512
        %s514 = smul.u32 8, %s31
        %s515 = ssub.s32 9, %s514
        %p516 = scmp.lt.s32.totalorder %s515, 8
        %s517 = scalar_select %p516, %s515, 8
        %s518 = smul.u32 128, %s517
        %s519 = smul.u32 %s518, 2
        %p520 = scmp.lt.s32.totalorder %s30, 1
        %s521 = scalar_select %p520, %s30, 1
        %p522 = scmp.lt.s32.totalorder %s514, 8
        %s523 = scalar_select %p522, %s514, 8
        %s524 = smul.addr %s523, 2
        %s525 = smul.addr %s521, 18
        %s526 = sadd.s32 %s524, %s525
        %s527 = smul.addr %s526, 8
        %s528 = scalar_lea.vmem %s0, %s527
        %s529 = smul.u32 8, %s31
        %s530 = ssub.s32 9, %s529
        %p531 = scmp.lt.s32.totalorder %s530, 8
        %s532 = scalar_select %p531, %s530, 8
        %s533 = smul.u32 128, %s532
        %s534 = smul.u32 %s533, 2
        %s535 = sadd.s32 %s31, 1
        %s536 = smul.u32 %s535, 8
        %p537 = scmp.lt.s32.totalorder %s30, 1
        %s538 = scalar_select %p537, %s30, 1
        %p539 = scmp.lt.s32.totalorder %s536, 8
        %s540 = scalar_select %p539, %s536, 8
        %s541 = smul.addr %s540, 2
        %s542 = smul.addr %s538, 18
        %s543 = sadd.s32 %s541, %s542
        %s544 = smul.addr %s543, 8
        %s545 = scalar_lea.vmem %s1, %s544
        %s546 = sadd.s32 %s31, 1
        %s547 = smul.u32 %s546, 8
        %s548 = smul.u32 8, %s31
        %s549 = ssub.s32 9, %s548
        %p550 = scmp.lt.s32.totalorder %s549, 8
        %s551 = scalar_select %p550, %s549, 8
        %s552 = smul.u32 128, %s551
        %p553 = scmp.lt.s32.totalorder %s30, 1
        %s554 = scalar_select %p553, %s30, 1
        %p555 = scmp.lt.s32.totalorder %s548, 8
        %s556 = scalar_select %p555, %s548, 8
        %s557 = smul.addr %s554, 9
        %s558 = sadd.s32 %s556, %s557
        %s559 = smul.addr %s558, 8
        %s560 = scalar_lea.vmem %s2, %s559
        %s561 = smul.u32 8, %s31
        %s562 = ssub.s32 9, %s561
        %p563 = scmp.lt.s32.totalorder %s562, 8
        %s564 = scalar_select %p563, %s562, 8
        %s565 = smul.u32 128, %s564
        %s566 = sadd.s32 %s31, 1
        %s567 = smul.u32 %s566, 8
        %p568 = scmp.lt.s32.totalorder %s30, 1
        %s569 = scalar_select %p568, %s30, 1
        %p570 = scmp.lt.s32.totalorder %s567, 8
        %s571 = scalar_select %p570, %s567, 8
        %s572 = smul.addr %s569, 9
        %s573 = sadd.s32 %s571, %s572
        %s574 = smul.addr %s573, 8
        %s575 = scalar_lea.vmem %s3, %s574
        %s576 = sadd.s32 %s31, 1
        %s577 = smul.u32 %s576, 8
        %s578 = smul.u32 8, %s31
        %p579 = scmp.lt.s32.totalorder %s30, 1
        %s580 = scalar_select %p579, %s30, 1
        %p581 = scmp.lt.s32.totalorder %s578, 7
        %s582 = scalar_select %p581, %s578, 7
        %s583 = smul.addr %s582, 2
        %s584 = smul.addr %s580, 16
        %s585 = sadd.s32 %s583, %s584
        %s586 = smul.addr %s585, 8
        %s587 = scalar_lea.vmem %s4, %s586
        %s588 = smul.u32 8, %s31
        %s589 = smul.u32 8, %s31
        %p590 = scmp.lt.s32.totalorder %s30, 1
        %s591 = scalar_select %p590, %s30, 1
        %p592 = scmp.lt.s32.totalorder %s589, 7
        %s593 = scalar_select %p592, %s589, 7
        %s594 = smul.addr %s591, 8
        %s595 = sadd.s32 %s593, %s594
        %s596 = smul.addr %s595, 8
        %s597 = scalar_lea.vmem %s5, %s596
        %s598 = smul.u32 8, %s31
        %s599 = smul.u32 8, %s31
        %v600 = vld [vmem:[%s528] sm:$0xff]
        %v601 = vld [vmem:[%s528 + $0x8] sm:$0x1]
        %v602 = vld [vmem:[%s528 + $0x10] sm:$0xff]
        %v603 = vld [vmem:[%s528 + $0x18] sm:$0x1]
        %v604 = vld [vmem:[%s528 + $0x20] sm:$0xff]
        %v605 = vld [vmem:[%s528 + $0x28] sm:$0x1]
        %v606 = vld [vmem:[%s528 + $0x30] sm:$0xff]
        %v607 = vld [vmem:[%s528 + $0x38] sm:$0x1]
        %v608 = vld [vmem:[%s528 + $0x40] sm:$0xff]
        %v609 = vld [vmem:[%s528 + $0x48] sm:$0x1]
        %v610 = vld [vmem:[%s528 + $0x50] sm:$0xff]
        %v611 = vld [vmem:[%s528 + $0x58] sm:$0x1]
        %v612 = vld [vmem:[%s528 + $0x60] sm:$0xff]
        %v613 = vld [vmem:[%s528 + $0x68] sm:$0x1]
        %v614 = vld [vmem:[%s528 + $0x70] sm:$0xff]
        %v615 = vld [vmem:[%s528 + $0x78] sm:$0x1]
        %v616 = vld [vmem:[%s560] sm:$0xff]
        %v617 = vld [vmem:[%s560 + $0x8] sm:$0xff]
        %v618 = vld [vmem:[%s560 + $0x10] sm:$0xff]
        %v619 = vld [vmem:[%s560 + $0x18] sm:$0xff]
        %v620 = vld [vmem:[%s560 + $0x20] sm:$0xff]
        %v621 = vld [vmem:[%s560 + $0x28] sm:$0xff]
        %v622 = vld [vmem:[%s560 + $0x30] sm:$0xff]
        %v623 = vld [vmem:[%s560 + $0x38] sm:$0xff]
        %v624 = vld [vmem:[%s587] sm:$0xff]
        %v625 = vld [vmem:[%s587 + $0x8] sm:$0x1]
        %v626 = vld [vmem:[%s587 + $0x10] sm:$0xff]
        %v627 = vld [vmem:[%s587 + $0x18] sm:$0x1]
        %v628 = vld [vmem:[%s587 + $0x20] sm:$0xff]
        %v629 = vld [vmem:[%s587 + $0x28] sm:$0x1]
        %v630 = vld [vmem:[%s587 + $0x30] sm:$0xff]
        %v631 = vld [vmem:[%s587 + $0x38] sm:$0x1]
        %v632 = vld [vmem:[%s587 + $0x40] sm:$0xff]
        %v633 = vld [vmem:[%s587 + $0x48] sm:$0x1]
        %v634 = vld [vmem:[%s587 + $0x50] sm:$0xff]
        %v635 = vld [vmem:[%s587 + $0x58] sm:$0x1]
        %v636 = vld [vmem:[%s587 + $0x60] sm:$0xff]
        %v637 = vld [vmem:[%s587 + $0x68] sm:$0x1]
        %v638 = vld [vmem:[%s587 + $0x70] sm:$0xff]
        %v639 = vld [vmem:[%s587 + $0x78] sm:$0x1]
        %v640 = vld [vmem:[%s597] sm:$0xff]
        %v641 = vld [vmem:[%s597 + $0x8] sm:$0xff]
        %v642 = vld [vmem:[%s597 + $0x10] sm:$0xff]
        %v643 = vld [vmem:[%s597 + $0x18] sm:$0xff]
        %v644 = vld [vmem:[%s597 + $0x20] sm:$0xff]
        %v645 = vld [vmem:[%s597 + $0x28] sm:$0xff]
        %v646 = vld [vmem:[%s597 + $0x30] sm:$0xff]
        %v647 = vld [vmem:[%s597 + $0x38] sm:$0xff]
        %v648 = vld [vmem:[%s545] sm:$0xff]
        %v649 = vld [vmem:[%s545 + $0x8] sm:$0x1]
        %v650 = vld [vmem:[%s575] sm:$0xff]
        %v651 = vld [vmem:[%s6] sm:$0xf]
        %s652 = scalar_lea.vmem %s6, 4
        %v653 = vld [vmem:[%s652] sm:$0xf]
        %vm654 = vcmask 31744
        %v656 = vsel %vm654, %v616, 0
        %v659 = vsel %vm654, %v617, 0
        %v662 = vsel %vm654, %v618, 0
        %v665 = vsel %vm654, %v619, 0
        %v668 = vsel %vm654, %v620, 0
        %v671 = vsel %vm654, %v621, 0
        %v674 = vsel %vm654, %v622, 0
        %v677 = vsel %vm654, %v623, 0
        %vm679 = vcmask 1043456
        %v681 = vsel %vm679, %v653, 0
        %683 = vmatprep.subr.mxu0 0.0
        %684 = vmatpush1.msra.mxu0 %v681
        %685 = vmatprep.subr.mxu0 0.0
        %686 = vmatpush1.msra.mxu0 0.0
        %687 = vmatprep.subr.mxu0 0.0
        %688 = vmatpush1.msra.mxu0 0.0
        %689 = vmatprep.subr.mxu0 0.0
        %690 = vmatpush1.msra.mxu0 0.0
        %691 = vmatprep.subr.mxu0 0.0
        %692 = vmatpush1.msra.mxu0 0.0
        %693 = vmatprep.subr.mxu0 0.0
        %694 = vmatpush1.msra.mxu0 0.0
        %695 = vmatprep.subr.mxu0 0.0
        %696 = vmatpush1.msra.mxu0 0.0
        %697 = vmatprep.subr.mxu0 0.0
        %698 = vmatpush1.msra.mxu0 0.0
        %699 = vmatprep.subr.mxu0 0.0
        %700 = vmatpush1.msra.mxu0 0.0
        %701 = vmatprep.subr.mxu0 0.0
        %702 = vmatpush1.msra.mxu0 0.0
        %703 = vmatprep.subr.mxu0 0.0
        %704 = vmatpush1.msra.mxu0 0.0
        %705 = vmatprep.subr.mxu0 0.0
        %706 = vmatpush1.msra.mxu0 0.0
        %707 = vmatprep.subr.mxu0 0.0
        %708 = vmatpush1.msra.mxu0 0.0
        %709 = vmatprep.subr.mxu0 0.0
        %710 = vmatpush1.msra.mxu0 0.0
        %711 = vmatprep.subr.mxu0 0.0
        %712 = vmatpush1.msra.mxu0 0.0
        %713 = vmatprep.subr.mxu0 0.0
        %714 = vmatpush1.msra.mxu0 0.0
        %715 = vmatprep.subr.mxu0 0.0
        %716 = vmatpush1.msra.mxu0 0.0
        %717 = vmatprep.subr.mxu0 0.0
        %718 = vmatpush1.msra.mxu0 0.0
        %719 = vmatprep.subr.mxu0 0.0
        %720 = vmatpush1.msra.mxu0 0.0
        %721 = vmatprep.subr.mxu0 0.0
        %722 = vmatpush1.msra.mxu0 0.0
        %723 = vmatprep.subr.mxu0 0.0
        %724 = vmatpush1.msra.mxu0 0.0
        %725 = vmatprep.subr.mxu0 0.0
        %726 = vmatpush1.msra.mxu0 0.0
        %727 = vmatprep.subr.mxu0 0.0
        %728 = vmatpush1.msra.mxu0 0.0
        %729 = vmatprep.subr.mxu0 0.0
        %730 = vmatpush1.msra.mxu0 0.0
        %731 = vmatprep.subr.mxu0 0.0
        %732 = vmatpush1.msra.mxu0 0.0
        %733 = vmatprep.subr.mxu0 0.0
        %734 = vmatpush1.msra.mxu0 0.0
        %735 = vmatprep.subr.mxu0 0.0
        %736 = vmatpush1.msra.mxu0 0.0
        %737 = vmatprep.subr.mxu0 0.0
        %738 = vmatpush1.msra.mxu0 0.0
        %739 = vmatprep.subr.mxu0 0.0
        %740 = vmatpush1.msra.mxu0 0.0
        %741 = vmatprep.subr.mxu0 0.0
        %742 = vmatpush1.msra.mxu0 0.0
        %743 = vmatprep.subr.mxu0 0.0
        %744 = vmatpush1.msra.mxu0 0.0
        %745 = vmatprep.subr.mxu0 0.0
        %746 = vmatpush1.msra.mxu0 0.0
        %747 = vmatprep.mubr.f32.mxu0 0.0
        %748 = vmatmul.mubr.f32.gmra.mrb[0].mxu0 %v656
        %v749 = vpop.f32.mrb[0].mxu0
        %v750 = vadd.f32 0.0, %v749
        %v751 = vpop.f32.mrb[0].mxu0
        %752 = vmatprep.mubr.f32.mxu0 0.0
        %753 = vmatmul.mubr.f32.gmra.mrb[0].mxu0 %v659
        %v754 = vpop.f32.mrb[0].mxu0
        %v755 = vadd.f32 0.0, %v754
        %v756 = vpop.f32.mrb[0].mxu0
        %757 = vmatprep.mubr.f32.mxu0 0.0
        %758 = vmatmul.mubr.f32.gmra.mrb[0].mxu0 %v662
        %v759 = vpop.f32.mrb[0].mxu0
        %v760 = vadd.f32 0.0, %v759
        %v761 = vpop.f32.mrb[0].mxu0
        %762 = vmatprep.mubr.f32.mxu0 0.0
        %763 = vmatmul.mubr.f32.gmra.mrb[0].mxu0 %v665
        %v764 = vpop.f32.mrb[0].mxu0
        %v765 = vadd.f32 0.0, %v764
        %v766 = vpop.f32.mrb[0].mxu0
        %767 = vmatprep.mubr.f32.mxu0 0.0
        %768 = vmatmul.mubr.f32.gmra.mrb[0].mxu0 %v668
        %v769 = vpop.f32.mrb[0].mxu0
        %v770 = vadd.f32 0.0, %v769
        %v771 = vpop.f32.mrb[0].mxu0
        %772 = vmatprep.mubr.f32.mxu0 0.0
        %773 = vmatmul.mubr.f32.gmra.mrb[0].mxu0 %v671
        %v774 = vpop.f32.mrb[0].mxu0
        %v775 = vadd.f32 0.0, %v774
        %v776 = vpop.f32.mrb[0].mxu0
        %777 = vmatprep.mubr.f32.mxu0 0.0
        %778 = vmatmul.mubr.f32.gmra.mrb[0].mxu0 %v674
        %v779 = vpop.f32.mrb[0].mxu0
        %v780 = vadd.f32 0.0, %v779
        %v781 = vpop.f32.mrb[0].mxu0
        %782 = vmatprep.mubr.f32.mxu0 0.0
        %783 = vmatmul.mubr.f32.gmra.mrb[0].mxu0 %v677
        %v784 = vpop.f32.mrb[0].mxu0
        %v785 = vadd.f32 0.0, %v784
        %v786 = vpop.f32.mrb[0].mxu0
        %787 = vdwg.mxu0
        %v789 = vsel %vm654, %v600, 0
        %v792 = vsel %vm654, %v602, 0
        %v795 = vsel %vm654, %v604, 0
        %v798 = vsel %vm654, %v606, 0
        %v801 = vsel %vm654, %v608, 0
        %v804 = vsel %vm654, %v610, 0
        %v807 = vsel %vm654, %v612, 0
        %v810 = vsel %vm654, %v614, 0
        %v813 = vsel %vm679, %v651, 0
        %815 = vmatprep.subr.mxu0 0.0
        %816 = vmatpush1.msra.mxu0 %v813
        %817 = vmatprep.subr.mxu0 0.0
        %818 = vmatpush1.msra.mxu0 0.0
        %819 = vmatprep.subr.mxu0 0.0
        %820 = vmatpush1.msra.mxu0 0.0
        %821 = vmatprep.subr.mxu0 0.0
        %822 = vmatpush1.msra.mxu0 0.0
        %823 = vmatprep.subr.mxu0 0.0
        %824 = vmatpush1.msra.mxu0 0.0
        %825 = vmatprep.subr.mxu0 0.0
        %826 = vmatpush1.msra.mxu0 0.0
        %827 = vmatprep.subr.mxu0 0.0
        %828 = vmatpush1.msra.mxu0 0.0
        %829 = vmatprep.subr.mxu0 0.0
        %830 = vmatpush1.msra.mxu0 0.0
        %831 = vmatprep.subr.mxu0 0.0
        %832 = vmatpush1.msra.mxu0 0.0
        %833 = vmatprep.subr.mxu0 0.0
        %834 = vmatpush1.msra.mxu0 0.0
        %835 = vmatprep.subr.mxu0 0.0
        %836 = vmatpush1.msra.mxu0 0.0
        %837 = vmatprep.subr.mxu0 0.0
        %838 = vmatpush1.msra.mxu0 0.0
        %839 = vmatprep.subr.mxu0 0.0
        %840 = vmatpush1.msra.mxu0 0.0
        %841 = vmatprep.subr.mxu0 0.0
        %842 = vmatpush1.msra.mxu0 0.0
        %843 = vmatprep.subr.mxu0 0.0
        %844 = vmatpush1.msra.mxu0 0.0
        %845 = vmatprep.subr.mxu0 0.0
        %846 = vmatpush1.msra.mxu0 0.0
        %847 = vmatprep.subr.mxu0 0.0
        %848 = vmatpush1.msra.mxu0 0.0
        %849 = vmatprep.subr.mxu0 0.0
        %850 = vmatpush1.msra.mxu0 0.0
        %851 = vmatprep.subr.mxu0 0.0
        %852 = vmatpush1.msra.mxu0 0.0
        %853 = vmatprep.subr.mxu0 0.0
        %854 = vmatpush1.msra.mxu0 0.0
        %855 = vmatprep.subr.mxu0 0.0
        %856 = vmatpush1.msra.mxu0 0.0
        %857 = vmatprep.subr.mxu0 0.0
        %858 = vmatpush1.msra.mxu0 0.0
        %859 = vmatprep.subr.mxu0 0.0
        %860 = vmatpush1.msra.mxu0 0.0
        %861 = vmatprep.subr.mxu0 0.0
        %862 = vmatpush1.msra.mxu0 0.0
        %863 = vmatprep.subr.mxu0 0.0
        %864 = vmatpush1.msra.mxu0 0.0
        %865 = vmatprep.subr.mxu0 0.0
        %866 = vmatpush1.msra.mxu0 0.0
        %867 = vmatprep.subr.mxu0 0.0
        %868 = vmatpush1.msra.mxu0 0.0
        %869 = vmatprep.subr.mxu0 0.0
        %870 = vmatpush1.msra.mxu0 0.0
        %871 = vmatprep.subr.mxu0 0.0
        %872 = vmatpush1.msra.mxu0 0.0
        %873 = vmatprep.subr.mxu0 0.0
        %874 = vmatpush1.msra.mxu0 0.0
        %875 = vmatprep.subr.mxu0 0.0
        %876 = vmatpush1.msra.mxu0 0.0
        %877 = vmatprep.subr.mxu0 0.0
        %878 = vmatpush1.msra.mxu0 0.0
        %879 = vmatprep.mubr.f32.mxu0 0.0
        %880 = vmatmul.mubr.f32.gmra.mrb[0].mxu0 %v789
        %v881 = vpop.f32.mrb[0].mxu0
        %v882 = vadd.f32 %v750, %v881
        %v883 = vpop.f32.mrb[0].mxu0
        %884 = vmatprep.mubr.f32.mxu0 0.0
        %885 = vmatmul.mubr.f32.gmra.mrb[0].mxu0 %v792
        %v886 = vpop.f32.mrb[0].mxu0
        %v887 = vadd.f32 %v755, %v886
        %v888 = vpop.f32.mrb[0].mxu0
        %889 = vmatprep.mubr.f32.mxu0 0.0
        %890 = vmatmul.mubr.f32.gmra.mrb[0].mxu0 %v795
        %v891 = vpop.f32.mrb[0].mxu0
        %v892 = vadd.f32 %v760, %v891
        %v893 = vpop.f32.mrb[0].mxu0
        %894 = vmatprep.mubr.f32.mxu0 0.0
        %895 = vmatmul.mubr.f32.gmra.mrb[0].mxu0 %v798
        %v896 = vpop.f32.mrb[0].mxu0
        %v897 = vadd.f32 %v765, %v896
        %v898 = vpop.f32.mrb[0].mxu0
        %899 = vmatprep.mubr.f32.mxu0 0.0
        %900 = vmatmul.mubr.f32.gmra.mrb[0].mxu0 %v801
        %v901 = vpop.f32.mrb[0].mxu0
        %v902 = vadd.f32 %v770, %v901
        %v903 = vpop.f32.mrb[0].mxu0
        %904 = vmatprep.mubr.f32.mxu0 0.0
        %905 = vmatmul.mubr.f32.gmra.mrb[0].mxu0 %v804
        %v906 = vpop.f32.mrb[0].mxu0
        %v907 = vadd.f32 %v775, %v906
        %v908 = vpop.f32.mrb[0].mxu0
        %909 = vmatprep.mubr.f32.mxu0 0.0
        %910 = vmatmul.mubr.f32.gmra.mrb[0].mxu0 %v807
        %v911 = vpop.f32.mrb[0].mxu0
        %v912 = vadd.f32 %v780, %v911
        %v913 = vpop.f32.mrb[0].mxu0
        %914 = vmatprep.mubr.f32.mxu0 0.0
        %915 = vmatmul.mubr.f32.gmra.mrb[0].mxu0 %v810
        %v916 = vpop.f32.mrb[0].mxu0
        %v917 = vadd.f32 %v785, %v916
        %v918 = vpop.f32.mrb[0].mxu0
        %919 = vdwg.mxu0
        %vm928 = vcmask 1046528
        %v929 = vrot.slane %v600, 1
        %v930 = vrot.slane %v601, 1
        %v931 = vsel %vm928, %v929, %v930
        %v932 = vrot.slane %v602, 1
        %v933 = vrot.slane %v603, 1
        %v934 = vsel %vm928, %v932, %v933
        %v935 = vrot.slane %v604, 1
        %v936 = vrot.slane %v605, 1
        %v937 = vsel %vm928, %v935, %v936
        %v938 = vrot.slane %v606, 1
        %v939 = vrot.slane %v607, 1
        %v940 = vsel %vm928, %v938, %v939
        %v941 = vrot.slane %v608, 1
        %v942 = vrot.slane %v609, 1
        %v943 = vsel %vm928, %v941, %v942
        %v944 = vrot.slane %v610, 1
        %v945 = vrot.slane %v611, 1
        %v946 = vsel %vm928, %v944, %v945
        %v947 = vrot.slane %v612, 1
        %v948 = vrot.slane %v613, 1
        %v949 = vsel %vm928, %v947, %v948
        %v950 = vrot.slane %v614, 1
        %v951 = vrot.slane %v615, 1
        %v952 = vsel %vm928, %v950, %v951
        %s953 = scalar_lea.vmem %s6, 8
        %v954 = vld [vmem:[%s953] sm:$0xf]
        %v955 = vsel %vm654, %v931, 0
        %v957 = vsel %vm654, %v934, 0
        %v959 = vsel %vm654, %v937, 0
        %v961 = vsel %vm654, %v940, 0
        %v963 = vsel %vm654, %v943, 0
        %v965 = vsel %vm654, %v946, 0
        %v967 = vsel %vm654, %v949, 0
        %v969 = vsel %vm654, %v952, 0
        %v972 = vsel %vm679, %v954, 0
        %974 = vmatprep.subr.mxu0 0.0
        %975 = vmatpush1.msra.mxu0 %v972
        %976 = vmatprep.subr.mxu0 0.0
        %977 = vmatpush1.msra.mxu0 0.0
        %978 = vmatprep.subr.mxu0 0.0
        %979 = vmatpush1.msra.mxu0 0.0
        %980 = vmatprep.subr.mxu0 0.0
        %981 = vmatpush1.msra.mxu0 0.0
        %982 = vmatprep.subr.mxu0 0.0
        %983 = vmatpush1.msra.mxu0 0.0
        %984 = vmatprep.subr.mxu0 0.0
        %985 = vmatpush1.msra.mxu0 0.0
        %986 = vmatprep.subr.mxu0 0.0
        %987 = vmatpush1.msra.mxu0 0.0
        %988 = vmatprep.subr.mxu0 0.0
        %989 = vmatpush1.msra.mxu0 0.0
        %990 = vmatprep.subr.mxu0 0.0
        %991 = vmatpush1.msra.mxu0 0.0
        %992 = vmatprep.subr.mxu0 0.0
        %993 = vmatpush1.msra.mxu0 0.0
        %994 = vmatprep.subr.mxu0 0.0
        %995 = vmatpush1.msra.mxu0 0.0
        %996 = vmatprep.subr.mxu0 0.0
        %997 = vmatpush1.msra.mxu0 0.0
        %998 = vmatprep.subr.mxu0 0.0
        %999 = vmatpush1.msra.mxu0 0.0
        %1000 = vmatprep.subr.mxu0 0.0
        %1001 = vmatpush1.msra.mxu0 0.0
        %1002 = vmatprep.subr.mxu0 0.0
        %1003 = vmatpush1.msra.mxu0 0.0
        %1004 = vmatprep.subr.mxu0 0.0
        %1005 = vmatpush1.msra.mxu0 0.0
        %1006 = vmatprep.subr.mxu0 0.0
        %1007 = vmatpush1.msra.mxu0 0.0
        %1008 = vmatprep.subr.mxu0 0.0
        %1009 = vmatpush1.msra.mxu0 0.0
        %1010 = vmatprep.subr.mxu0 0.0
        %1011 = vmatpush1.msra.mxu0 0.0
        %1012 = vmatprep.subr.mxu0 0.0
        %1013 = vmatpush1.msra.mxu0 0.0
        %1014 = vmatprep.subr.mxu0 0.0
        %1015 = vmatpush1.msra.mxu0 0.0
        %1016 = vmatprep.subr.mxu0 0.0
        %1017 = vmatpush1.msra.mxu0 0.0
        %1018 = vmatprep.subr.mxu0 0.0
        %1019 = vmatpush1.msra.mxu0 0.0
        %1020 = vmatprep.subr.mxu0 0.0
        %1021 = vmatpush1.msra.mxu0 0.0
        %1022 = vmatprep.subr.mxu0 0.0
        %1023 = vmatpush1.msra.mxu0 0.0
        %1024 = vmatprep.subr.mxu0 0.0
        %1025 = vmatpush1.msra.mxu0 0.0
        %1026 = vmatprep.subr.mxu0 0.0
        %1027 = vmatpush1.msra.mxu0 0.0
        %1028 = vmatprep.subr.mxu0 0.0
        %1029 = vmatpush1.msra.mxu0 0.0
        %1030 = vmatprep.subr.mxu0 0.0
        %1031 = vmatpush1.msra.mxu0 0.0
        %1032 = vmatprep.subr.mxu0 0.0
        %1033 = vmatpush1.msra.mxu0 0.0
        %1034 = vmatprep.subr.mxu0 0.0
        %1035 = vmatpush1.msra.mxu0 0.0
        %1036 = vmatprep.subr.mxu0 0.0
        %1037 = vmatpush1.msra.mxu0 0.0
        %1038 = vmatprep.mubr.f32.mxu0 0.0
        %1039 = vmatmul.mubr.f32.gmra.mrb[0].mxu0 %v955
        %v1040 = vpop.f32.mrb[0].mxu0
        %v1041 = vadd.f32 0.0, %v1040
        %v1042 = vpop.f32.mrb[0].mxu0
        %1043 = vmatprep.mubr.f32.mxu0 0.0
        %1044 = vmatmul.mubr.f32.gmra.mrb[0].mxu0 %v957
        %v1045 = vpop.f32.mrb[0].mxu0
        %v1046 = vadd.f32 0.0, %v1045
        %v1047 = vpop.f32.mrb[0].mxu0
        %1048 = vmatprep.mubr.f32.mxu0 0.0
        %1049 = vmatmul.mubr.f32.gmra.mrb[0].mxu0 %v959
        %v1050 = vpop.f32.mrb[0].mxu0
        %v1051 = vadd.f32 0.0, %v1050
        %v1052 = vpop.f32.mrb[0].mxu0
        %1053 = vmatprep.mubr.f32.mxu0 0.0
        %1054 = vmatmul.mubr.f32.gmra.mrb[0].mxu0 %v961
        %v1055 = vpop.f32.mrb[0].mxu0
        %v1056 = vadd.f32 0.0, %v1055
        %v1057 = vpop.f32.mrb[0].mxu0
        %1058 = vmatprep.mubr.f32.mxu0 0.0
        %1059 = vmatmul.mubr.f32.gmra.mrb[0].mxu0 %v963
        %v1060 = vpop.f32.mrb[0].mxu0
        %v1061 = vadd.f32 0.0, %v1060
        %v1062 = vpop.f32.mrb[0].mxu0
        %1063 = vmatprep.mubr.f32.mxu0 0.0
        %1064 = vmatmul.mubr.f32.gmra.mrb[0].mxu0 %v965
        %v1065 = vpop.f32.mrb[0].mxu0
        %v1066 = vadd.f32 0.0, %v1065
        %v1067 = vpop.f32.mrb[0].mxu0
        %1068 = vmatprep.mubr.f32.mxu0 0.0
        %1069 = vmatmul.mubr.f32.gmra.mrb[0].mxu0 %v967
        %v1070 = vpop.f32.mrb[0].mxu0
        %v1071 = vadd.f32 0.0, %v1070
        %v1072 = vpop.f32.mrb[0].mxu0
        %1073 = vmatprep.mubr.f32.mxu0 0.0
        %1074 = vmatmul.mubr.f32.gmra.mrb[0].mxu0 %v969
        %v1075 = vpop.f32.mrb[0].mxu0
        %v1076 = vadd.f32 0.0, %v1075
        %v1077 = vpop.f32.mrb[0].mxu0
        %1078 = vdwg.mxu0
        %v1079 = vadd.f32 %v882, %v1041
        %v1080 = vadd.f32 %v887, %v1046
        %v1081 = vadd.f32 %v892, %v1051
        %v1082 = vadd.f32 %v897, %v1056
        %v1083 = vadd.f32 %v902, %v1061
        %v1084 = vadd.f32 %v907, %v1066
        %v1085 = vadd.f32 %v912, %v1071
        %v1086 = vadd.f32 %v917, %v1076
        %s1087 = scalar_lea.vmem %s6, 12
        %v1088 = vld [vmem:[%s1087] sm:$0xf]
        %v1090 = vsel %vm654, %v624, 0
        %v1093 = vsel %vm654, %v626, 0
        %v1096 = vsel %vm654, %v628, 0
        %v1099 = vsel %vm654, %v630, 0
        %v1102 = vsel %vm654, %v632, 0
        %v1105 = vsel %vm654, %v634, 0
        %v1108 = vsel %vm654, %v636, 0
        %v1111 = vsel %vm654, %v638, 0
        %v1114 = vsel %vm679, %v1088, 0
        %1116 = vmatprep.subr.mxu0 0.0
        %1117 = vmatpush1.msra.mxu0 %v1114
        %1118 = vmatprep.subr.mxu0 0.0
        %1119 = vmatpush1.msra.mxu0 0.0
        %1120 = vmatprep.subr.mxu0 0.0
        %1121 = vmatpush1.msra.mxu0 0.0
        %1122 = vmatprep.subr.mxu0 0.0
        %1123 = vmatpush1.msra.mxu0 0.0
        %1124 = vmatprep.subr.mxu0 0.0
        %1125 = vmatpush1.msra.mxu0 0.0
        %1126 = vmatprep.subr.mxu0 0.0
        %1127 = vmatpush1.msra.mxu0 0.0
        %1128 = vmatprep.subr.mxu0 0.0
        %1129 = vmatpush1.msra.mxu0 0.0
        %1130 = vmatprep.subr.mxu0 0.0
        %1131 = vmatpush1.msra.mxu0 0.0
        %1132 = vmatprep.subr.mxu0 0.0
        %1133 = vmatpush1.msra.mxu0 0.0
        %1134 = vmatprep.subr.mxu0 0.0
        %1135 = vmatpush1.msra.mxu0 0.0
        %1136 = vmatprep.subr.mxu0 0.0
        %1137 = vmatpush1.msra.mxu0 0.0
        %1138 = vmatprep.subr.mxu0 0.0
        %1139 = vmatpush1.msra.mxu0 0.0
        %1140 = vmatprep.subr.mxu0 0.0
        %1141 = vmatpush1.msra.mxu0 0.0
        %1142 = vmatprep.subr.mxu0 0.0
        %1143 = vmatpush1.msra.mxu0 0.0
        %1144 = vmatprep.subr.mxu0 0.0
        %1145 = vmatpush1.msra.mxu0 0.0
        %1146 = vmatprep.subr.mxu0 0.0
        %1147 = vmatpush1.msra.mxu0 0.0
        %1148 = vmatprep.subr.mxu0 0.0
        %1149 = vmatpush1.msra.mxu0 0.0
        %1150 = vmatprep.subr.mxu0 0.0
        %1151 = vmatpush1.msra.mxu0 0.0
        %1152 = vmatprep.subr.mxu0 0.0
        %1153 = vmatpush1.msra.mxu0 0.0
        %1154 = vmatprep.subr.mxu0 0.0
        %1155 = vmatpush1.msra.mxu0 0.0
        %1156 = vmatprep.subr.mxu0 0.0
        %1157 = vmatpush1.msra.mxu0 0.0
        %1158 = vmatprep.subr.mxu0 0.0
        %1159 = vmatpush1.msra.mxu0 0.0
        %1160 = vmatprep.subr.mxu0 0.0
        %1161 = vmatpush1.msra.mxu0 0.0
        %1162 = vmatprep.subr.mxu0 0.0
        %1163 = vmatpush1.msra.mxu0 0.0
        %1164 = vmatprep.subr.mxu0 0.0
        %1165 = vmatpush1.msra.mxu0 0.0
        %1166 = vmatprep.subr.mxu0 0.0
        %1167 = vmatpush1.msra.mxu0 0.0
        %1168 = vmatprep.subr.mxu0 0.0
        %1169 = vmatpush1.msra.mxu0 0.0
        %1170 = vmatprep.subr.mxu0 0.0
        %1171 = vmatpush1.msra.mxu0 0.0
        %1172 = vmatprep.subr.mxu0 0.0
        %1173 = vmatpush1.msra.mxu0 0.0
        %1174 = vmatprep.subr.mxu0 0.0
        %1175 = vmatpush1.msra.mxu0 0.0
        %1176 = vmatprep.subr.mxu0 0.0
        %1177 = vmatpush1.msra.mxu0 0.0
        %1178 = vmatprep.subr.mxu0 0.0
        %1179 = vmatpush1.msra.mxu0 0.0
        %1180 = vmatprep.mubr.f32.mxu0 0.0
        %1181 = vmatmul.mubr.f32.gmra.mrb[0].mxu0 %v1090
        %v1182 = vpop.f32.mrb[0].mxu0
        %v1183 = vadd.f32 0.0, %v1182
        %v1184 = vpop.f32.mrb[0].mxu0
        %1185 = vmatprep.mubr.f32.mxu0 0.0
        %1186 = vmatmul.mubr.f32.gmra.mrb[0].mxu0 %v1093
        %v1187 = vpop.f32.mrb[0].mxu0
        %v1188 = vadd.f32 0.0, %v1187
        %v1189 = vpop.f32.mrb[0].mxu0
        %1190 = vmatprep.mubr.f32.mxu0 0.0
        %1191 = vmatmul.mubr.f32.gmra.mrb[0].mxu0 %v1096
        %v1192 = vpop.f32.mrb[0].mxu0
        %v1193 = vadd.f32 0.0, %v1192
        %v1194 = vpop.f32.mrb[0].mxu0
        %1195 = vmatprep.mubr.f32.mxu0 0.0
        %1196 = vmatmul.mubr.f32.gmra.mrb[0].mxu0 %v1099
        %v1197 = vpop.f32.mrb[0].mxu0
        %v1198 = vadd.f32 0.0, %v1197
        %v1199 = vpop.f32.mrb[0].mxu0
        %1200 = vmatprep.mubr.f32.mxu0 0.0
        %1201 = vmatmul.mubr.f32.gmra.mrb[0].mxu0 %v1102
        %v1202 = vpop.f32.mrb[0].mxu0
        %v1203 = vadd.f32 0.0, %v1202
        %v1204 = vpop.f32.mrb[0].mxu0
        %1205 = vmatprep.mubr.f32.mxu0 0.0
        %1206 = vmatmul.mubr.f32.gmra.mrb[0].mxu0 %v1105
        %v1207 = vpop.f32.mrb[0].mxu0
        %v1208 = vadd.f32 0.0, %v1207
        %v1209 = vpop.f32.mrb[0].mxu0
        %1210 = vmatprep.mubr.f32.mxu0 0.0
        %1211 = vmatmul.mubr.f32.gmra.mrb[0].mxu0 %v1108
        %v1212 = vpop.f32.mrb[0].mxu0
        %v1213 = vadd.f32 0.0, %v1212
        %v1214 = vpop.f32.mrb[0].mxu0
        %1215 = vmatprep.mubr.f32.mxu0 0.0
        %1216 = vmatmul.mubr.f32.gmra.mrb[0].mxu0 %v1111
        %v1217 = vpop.f32.mrb[0].mxu0
        %v1218 = vadd.f32 0.0, %v1217
        %v1219 = vpop.f32.mrb[0].mxu0
        %1220 = vdwg.mxu0
        %v1221 = vadd.f32 %v1079, %v1183
        %v1222 = vadd.f32 %v1080, %v1188
        %v1223 = vadd.f32 %v1081, %v1193
        %v1224 = vadd.f32 %v1082, %v1198
        %v1225 = vadd.f32 %v1083, %v1203
        %v1226 = vadd.f32 %v1084, %v1208
        %v1227 = vadd.f32 %v1085, %v1213
        %v1228 = vadd.f32 %v1086, %v1218
        %s1229 = scalar_lea.vmem %s6, 16
        %v1230 = vld [vmem:[%s1229] sm:$0xf]
        %v1232 = vsel %vm654, %v640, 0
        %v1235 = vsel %vm654, %v641, 0
        %v1238 = vsel %vm654, %v642, 0
        %v1241 = vsel %vm654, %v643, 0
        %v1244 = vsel %vm654, %v644, 0
        %v1247 = vsel %vm654, %v645, 0
        %v1250 = vsel %vm654, %v646, 0
        %v1253 = vsel %vm654, %v647, 0
        %v1256 = vsel %vm679, %v1230, 0
        %1258 = vmatprep.subr.mxu0 0.0
        %1259 = vmatpush1.msra.mxu0 %v1256
        %1260 = vmatprep.subr.mxu0 0.0
        %1261 = vmatpush1.msra.mxu0 0.0
        %1262 = vmatprep.subr.mxu0 0.0
        %1263 = vmatpush1.msra.mxu0 0.0
        %1264 = vmatprep.subr.mxu0 0.0
        %1265 = vmatpush1.msra.mxu0 0.0
        %1266 = vmatprep.subr.mxu0 0.0
        %1267 = vmatpush1.msra.mxu0 0.0
        %1268 = vmatprep.subr.mxu0 0.0
        %1269 = vmatpush1.msra.mxu0 0.0
        %1270 = vmatprep.subr.mxu0 0.0
        %1271 = vmatpush1.msra.mxu0 0.0
        %1272 = vmatprep.subr.mxu0 0.0
        %1273 = vmatpush1.msra.mxu0 0.0
        %1274 = vmatprep.subr.mxu0 0.0
        %1275 = vmatpush1.msra.mxu0 0.0
        %1276 = vmatprep.subr.mxu0 0.0
        %1277 = vmatpush1.msra.mxu0 0.0
        %1278 = vmatprep.subr.mxu0 0.0
        %1279 = vmatpush1.msra.mxu0 0.0
        %1280 = vmatprep.subr.mxu0 0.0
        %1281 = vmatpush1.msra.mxu0 0.0
        %1282 = vmatprep.subr.mxu0 0.0
        %1283 = vmatpush1.msra.mxu0 0.0
        %1284 = vmatprep.subr.mxu0 0.0
        %1285 = vmatpush1.msra.mxu0 0.0
        %1286 = vmatprep.subr.mxu0 0.0
        %1287 = vmatpush1.msra.mxu0 0.0
        %1288 = vmatprep.subr.mxu0 0.0
        %1289 = vmatpush1.msra.mxu0 0.0
        %1290 = vmatprep.subr.mxu0 0.0
        %1291 = vmatpush1.msra.mxu0 0.0
        %1292 = vmatprep.subr.mxu0 0.0
        %1293 = vmatpush1.msra.mxu0 0.0
        %1294 = vmatprep.subr.mxu0 0.0
        %1295 = vmatpush1.msra.mxu0 0.0
        %1296 = vmatprep.subr.mxu0 0.0
        %1297 = vmatpush1.msra.mxu0 0.0
        %1298 = vmatprep.subr.mxu0 0.0
        %1299 = vmatpush1.msra.mxu0 0.0
        %1300 = vmatprep.subr.mxu0 0.0
        %1301 = vmatpush1.msra.mxu0 0.0
        %1302 = vmatprep.subr.mxu0 0.0
        %1303 = vmatpush1.msra.mxu0 0.0
        %1304 = vmatprep.subr.mxu0 0.0
        %1305 = vmatpush1.msra.mxu0 0.0
        %1306 = vmatprep.subr.mxu0 0.0
        %1307 = vmatpush1.msra.mxu0 0.0
        %1308 = vmatprep.subr.mxu0 0.0
        %1309 = vmatpush1.msra.mxu0 0.0
        %1310 = vmatprep.subr.mxu0 0.0
        %1311 = vmatpush1.msra.mxu0 0.0
        %1312 = vmatprep.subr.mxu0 0.0
        %1313 = vmatpush1.msra.mxu0 0.0
        %1314 = vmatprep.subr.mxu0 0.0
        %1315 = vmatpush1.msra.mxu0 0.0
        %1316 = vmatprep.subr.mxu0 0.0
        %1317 = vmatpush1.msra.mxu0 0.0
        %1318 = vmatprep.subr.mxu0 0.0
        %1319 = vmatpush1.msra.mxu0 0.0
        %1320 = vmatprep.subr.mxu0 0.0
        %1321 = vmatpush1.msra.mxu0 0.0
        %1322 = vmatprep.mubr.f32.mxu0 0.0
        %1323 = vmatmul.mubr.f32.gmra.mrb[0].mxu0 %v1232
        %v1324 = vpop.f32.mrb[0].mxu0
        %v1325 = vadd.f32 0.0, %v1324
        %v1326 = vpop.f32.mrb[0].mxu0
        %1327 = vmatprep.mubr.f32.mxu0 0.0
        %1328 = vmatmul.mubr.f32.gmra.mrb[0].mxu0 %v1235
        %v1329 = vpop.f32.mrb[0].mxu0
        %v1330 = vadd.f32 0.0, %v1329
        %v1331 = vpop.f32.mrb[0].mxu0
        %1332 = vmatprep.mubr.f32.mxu0 0.0
        %1333 = vmatmul.mubr.f32.gmra.mrb[0].mxu0 %v1238
        %v1334 = vpop.f32.mrb[0].mxu0
        %v1335 = vadd.f32 0.0, %v1334
        %v1336 = vpop.f32.mrb[0].mxu0
        %1337 = vmatprep.mubr.f32.mxu0 0.0
        %1338 = vmatmul.mubr.f32.gmra.mrb[0].mxu0 %v1241
        %v1339 = vpop.f32.mrb[0].mxu0
        %v1340 = vadd.f32 0.0, %v1339
        %v1341 = vpop.f32.mrb[0].mxu0
        %1342 = vmatprep.mubr.f32.mxu0 0.0
        %1343 = vmatmul.mubr.f32.gmra.mrb[0].mxu0 %v1244
        %v1344 = vpop.f32.mrb[0].mxu0
        %v1345 = vadd.f32 0.0, %v1344
        %v1346 = vpop.f32.mrb[0].mxu0
        %1347 = vmatprep.mubr.f32.mxu0 0.0
        %1348 = vmatmul.mubr.f32.gmra.mrb[0].mxu0 %v1247
        %v1349 = vpop.f32.mrb[0].mxu0
        %v1350 = vadd.f32 0.0, %v1349
        %v1351 = vpop.f32.mrb[0].mxu0
        %1352 = vmatprep.mubr.f32.mxu0 0.0
        %1353 = vmatmul.mubr.f32.gmra.mrb[0].mxu0 %v1250
        %v1354 = vpop.f32.mrb[0].mxu0
        %v1355 = vadd.f32 0.0, %v1354
        %v1356 = vpop.f32.mrb[0].mxu0
        %1357 = vmatprep.mubr.f32.mxu0 0.0
        %1358 = vmatmul.mubr.f32.gmra.mrb[0].mxu0 %v1253
        %v1359 = vpop.f32.mrb[0].mxu0
        %v1360 = vadd.f32 0.0, %v1359
        %v1361 = vpop.f32.mrb[0].mxu0
        %1362 = vdwg.mxu0
        %v1363 = vadd.f32 %v1221, %v1325
        %v1364 = vadd.f32 %v1222, %v1330
        %v1365 = vadd.f32 %v1223, %v1335
        %v1366 = vadd.f32 %v1224, %v1340
        %v1367 = vadd.f32 %v1225, %v1345
        %v1368 = vadd.f32 %v1226, %v1350
        %v1369 = vadd.f32 %v1227, %v1355
        %v1370 = vadd.f32 %v1228, %v1360
        %v1379 = vrot.slane %v624, 1
        %v1380 = vrot.slane %v625, 1
        %v1381 = vsel %vm928, %v1379, %v1380
        %v1382 = vrot.slane %v626, 1
        %v1383 = vrot.slane %v627, 1
        %v1384 = vsel %vm928, %v1382, %v1383
        %v1385 = vrot.slane %v628, 1
        %v1386 = vrot.slane %v629, 1
        %v1387 = vsel %vm928, %v1385, %v1386
        %v1388 = vrot.slane %v630, 1
        %v1389 = vrot.slane %v631, 1
        %v1390 = vsel %vm928, %v1388, %v1389
        %v1391 = vrot.slane %v632, 1
        %v1392 = vrot.slane %v633, 1
        %v1393 = vsel %vm928, %v1391, %v1392
        %v1394 = vrot.slane %v634, 1
        %v1395 = vrot.slane %v635, 1
        %v1396 = vsel %vm928, %v1394, %v1395
        %v1397 = vrot.slane %v636, 1
        %v1398 = vrot.slane %v637, 1
        %v1399 = vsel %vm928, %v1397, %v1398
        %v1400 = vrot.slane %v638, 1
        %v1401 = vrot.slane %v639, 1
        %v1402 = vsel %vm928, %v1400, %v1401
        %s1403 = scalar_lea.vmem %s6, 20
        %v1404 = vld [vmem:[%s1403] sm:$0xf]
        %v1405 = vsel %vm654, %v1381, 0
        %v1407 = vsel %vm654, %v1384, 0
        %v1409 = vsel %vm654, %v1387, 0
        %v1411 = vsel %vm654, %v1390, 0
        %v1413 = vsel %vm654, %v1393, 0
        %v1415 = vsel %vm654, %v1396, 0
        %v1417 = vsel %vm654, %v1399, 0
        %v1419 = vsel %vm654, %v1402, 0
        %v1422 = vsel %vm679, %v1404, 0
        %1424 = vmatprep.subr.mxu0 0.0
        %1425 = vmatpush1.msra.mxu0 %v1422
        %1426 = vmatprep.subr.mxu0 0.0
        %1427 = vmatpush1.msra.mxu0 0.0
        %1428 = vmatprep.subr.mxu0 0.0
        %1429 = vmatpush1.msra.mxu0 0.0
        %1430 = vmatprep.subr.mxu0 0.0
        %1431 = vmatpush1.msra.mxu0 0.0
        %1432 = vmatprep.subr.mxu0 0.0
        %1433 = vmatpush1.msra.mxu0 0.0
        %1434 = vmatprep.subr.mxu0 0.0
        %1435 = vmatpush1.msra.mxu0 0.0
        %1436 = vmatprep.subr.mxu0 0.0
        %1437 = vmatpush1.msra.mxu0 0.0
        %1438 = vmatprep.subr.mxu0 0.0
        %1439 = vmatpush1.msra.mxu0 0.0
        %1440 = vmatprep.subr.mxu0 0.0
        %1441 = vmatpush1.msra.mxu0 0.0
        %1442 = vmatprep.subr.mxu0 0.0
        %1443 = vmatpush1.msra.mxu0 0.0
        %1444 = vmatprep.subr.mxu0 0.0
        %1445 = vmatpush1.msra.mxu0 0.0
        %1446 = vmatprep.subr.mxu0 0.0
        %1447 = vmatpush1.msra.mxu0 0.0
        %1448 = vmatprep.subr.mxu0 0.0
        %1449 = vmatpush1.msra.mxu0 0.0
        %1450 = vmatprep.subr.mxu0 0.0
        %1451 = vmatpush1.msra.mxu0 0.0
        %1452 = vmatprep.subr.mxu0 0.0
        %1453 = vmatpush1.msra.mxu0 0.0
        %1454 = vmatprep.subr.mxu0 0.0
        %1455 = vmatpush1.msra.mxu0 0.0
        %1456 = vmatprep.subr.mxu0 0.0
        %1457 = vmatpush1.msra.mxu0 0.0
        %1458 = vmatprep.subr.mxu0 0.0
        %1459 = vmatpush1.msra.mxu0 0.0
        %1460 = vmatprep.subr.mxu0 0.0
        %1461 = vmatpush1.msra.mxu0 0.0
        %1462 = vmatprep.subr.mxu0 0.0
        %1463 = vmatpush1.msra.mxu0 0.0
        %1464 = vmatprep.subr.mxu0 0.0
        %1465 = vmatpush1.msra.mxu0 0.0
        %1466 = vmatprep.subr.mxu0 0.0
        %1467 = vmatpush1.msra.mxu0 0.0
        %1468 = vmatprep.subr.mxu0 0.0
        %1469 = vmatpush1.msra.mxu0 0.0
        %1470 = vmatprep.subr.mxu0 0.0
        %1471 = vmatpush1.msra.mxu0 0.0
        %1472 = vmatprep.subr.mxu0 0.0
        %1473 = vmatpush1.msra.mxu0 0.0
        %1474 = vmatprep.subr.mxu0 0.0
        %1475 = vmatpush1.msra.mxu0 0.0
        %1476 = vmatprep.subr.mxu0 0.0
        %1477 = vmatpush1.msra.mxu0 0.0
        %1478 = vmatprep.subr.mxu0 0.0
        %1479 = vmatpush1.msra.mxu0 0.0
        %1480 = vmatprep.subr.mxu0 0.0
        %1481 = vmatpush1.msra.mxu0 0.0
        %1482 = vmatprep.subr.mxu0 0.0
        %1483 = vmatpush1.msra.mxu0 0.0
        %1484 = vmatprep.subr.mxu0 0.0
        %1485 = vmatpush1.msra.mxu0 0.0
        %1486 = vmatprep.subr.mxu0 0.0
        %1487 = vmatpush1.msra.mxu0 0.0
        %1488 = vmatprep.mubr.f32.mxu0 0.0
        %1489 = vmatmul.mubr.f32.gmra.mrb[0].mxu0 %v1405
        %v1490 = vpop.f32.mrb[0].mxu0
        %v1491 = vadd.f32 0.0, %v1490
        %v1492 = vpop.f32.mrb[0].mxu0
        %1493 = vmatprep.mubr.f32.mxu0 0.0
        %1494 = vmatmul.mubr.f32.gmra.mrb[0].mxu0 %v1407
        %v1495 = vpop.f32.mrb[0].mxu0
        %v1496 = vadd.f32 0.0, %v1495
        %v1497 = vpop.f32.mrb[0].mxu0
        %1498 = vmatprep.mubr.f32.mxu0 0.0
        %1499 = vmatmul.mubr.f32.gmra.mrb[0].mxu0 %v1409
        %v1500 = vpop.f32.mrb[0].mxu0
        %v1501 = vadd.f32 0.0, %v1500
        %v1502 = vpop.f32.mrb[0].mxu0
        %1503 = vmatprep.mubr.f32.mxu0 0.0
        %1504 = vmatmul.mubr.f32.gmra.mrb[0].mxu0 %v1411
        %v1505 = vpop.f32.mrb[0].mxu0
        %v1506 = vadd.f32 0.0, %v1505
        %v1507 = vpop.f32.mrb[0].mxu0
        %1508 = vmatprep.mubr.f32.mxu0 0.0
        %1509 = vmatmul.mubr.f32.gmra.mrb[0].mxu0 %v1413
        %v1510 = vpop.f32.mrb[0].mxu0
        %v1511 = vadd.f32 0.0, %v1510
        %v1512 = vpop.f32.mrb[0].mxu0
        %1513 = vmatprep.mubr.f32.mxu0 0.0
        %1514 = vmatmul.mubr.f32.gmra.mrb[0].mxu0 %v1415
        %v1515 = vpop.f32.mrb[0].mxu0
        %v1516 = vadd.f32 0.0, %v1515
        %v1517 = vpop.f32.mrb[0].mxu0
        %1518 = vmatprep.mubr.f32.mxu0 0.0
        %1519 = vmatmul.mubr.f32.gmra.mrb[0].mxu0 %v1417
        %v1520 = vpop.f32.mrb[0].mxu0
        %v1521 = vadd.f32 0.0, %v1520
        %v1522 = vpop.f32.mrb[0].mxu0
        %1523 = vmatprep.mubr.f32.mxu0 0.0
        %1524 = vmatmul.mubr.f32.gmra.mrb[0].mxu0 %v1419
        %v1525 = vpop.f32.mrb[0].mxu0
        %v1526 = vadd.f32 0.0, %v1525
        %v1527 = vpop.f32.mrb[0].mxu0
        %1528 = vdwg.mxu0
        %v1529 = vadd.f32 %v1363, %v1491
        %v1530 = vadd.f32 %v1364, %v1496
        %v1531 = vadd.f32 %v1365, %v1501
        %v1532 = vadd.f32 %v1366, %v1506
        %v1533 = vadd.f32 %v1367, %v1511
        %v1534 = vadd.f32 %v1368, %v1516
        %v1535 = vadd.f32 %v1369, %v1521
        %v1536 = vadd.f32 %v1370, %v1526
        %s1537 = scalar_lea.vmem %s6, 24
        %v1538 = vld [vmem:[%s1537] sm:$0xf]
        %v1540 = vsel %vm654, %v648, 0
        %v1543 = vsel %vm679, %v1538, 0
        %1545 = vmatprep.subr.mxu0 0.0
        %1546 = vmatpush1.msra.mxu0 %v1543
        %1547 = vmatprep.subr.mxu0 0.0
        %1548 = vmatpush1.msra.mxu0 0.0
        %1549 = vmatprep.subr.mxu0 0.0
        %1550 = vmatpush1.msra.mxu0 0.0
        %1551 = vmatprep.subr.mxu0 0.0
        %1552 = vmatpush1.msra.mxu0 0.0
        %1553 = vmatprep.subr.mxu0 0.0
        %1554 = vmatpush1.msra.mxu0 0.0
        %1555 = vmatprep.subr.mxu0 0.0
        %1556 = vmatpush1.msra.mxu0 0.0
        %1557 = vmatprep.subr.mxu0 0.0
        %1558 = vmatpush1.msra.mxu0 0.0
        %1559 = vmatprep.subr.mxu0 0.0
        %1560 = vmatpush1.msra.mxu0 0.0
        %1561 = vmatprep.subr.mxu0 0.0
        %1562 = vmatpush1.msra.mxu0 0.0
        %1563 = vmatprep.subr.mxu0 0.0
        %1564 = vmatpush1.msra.mxu0 0.0
        %1565 = vmatprep.subr.mxu0 0.0
        %1566 = vmatpush1.msra.mxu0 0.0
        %1567 = vmatprep.subr.mxu0 0.0
        %1568 = vmatpush1.msra.mxu0 0.0
        %1569 = vmatprep.subr.mxu0 0.0
        %1570 = vmatpush1.msra.mxu0 0.0
        %1571 = vmatprep.subr.mxu0 0.0
        %1572 = vmatpush1.msra.mxu0 0.0
        %1573 = vmatprep.subr.mxu0 0.0
        %1574 = vmatpush1.msra.mxu0 0.0
        %1575 = vmatprep.subr.mxu0 0.0
        %1576 = vmatpush1.msra.mxu0 0.0
        %1577 = vmatprep.subr.mxu0 0.0
        %1578 = vmatpush1.msra.mxu0 0.0
        %1579 = vmatprep.subr.mxu0 0.0
        %1580 = vmatpush1.msra.mxu0 0.0
        %1581 = vmatprep.subr.mxu0 0.0
        %1582 = vmatpush1.msra.mxu0 0.0
        %1583 = vmatprep.subr.mxu0 0.0
        %1584 = vmatpush1.msra.mxu0 0.0
        %1585 = vmatprep.subr.mxu0 0.0
        %1586 = vmatpush1.msra.mxu0 0.0
        %1587 = vmatprep.subr.mxu0 0.0
        %1588 = vmatpush1.msra.mxu0 0.0
        %1589 = vmatprep.subr.mxu0 0.0
        %1590 = vmatpush1.msra.mxu0 0.0
        %1591 = vmatprep.subr.mxu0 0.0
        %1592 = vmatpush1.msra.mxu0 0.0
        %1593 = vmatprep.subr.mxu0 0.0
        %1594 = vmatpush1.msra.mxu0 0.0
        %1595 = vmatprep.subr.mxu0 0.0
        %1596 = vmatpush1.msra.mxu0 0.0
        %1597 = vmatprep.subr.mxu0 0.0
        %1598 = vmatpush1.msra.mxu0 0.0
        %1599 = vmatprep.subr.mxu0 0.0
        %1600 = vmatpush1.msra.mxu0 0.0
        %1601 = vmatprep.subr.mxu0 0.0
        %1602 = vmatpush1.msra.mxu0 0.0
        %1603 = vmatprep.subr.mxu0 0.0
        %1604 = vmatpush1.msra.mxu0 0.0
        %1605 = vmatprep.subr.mxu0 0.0
        %1606 = vmatpush1.msra.mxu0 0.0
        %1607 = vmatprep.subr.mxu0 0.0
        %1608 = vmatpush1.msra.mxu0 0.0
        %1609 = vmatprep.mubr.f32.mxu0 0.0
        %1610 = vmatmul.mubr.f32.gmra.mrb[0].mxu0 %v792
        %v1611 = vpop.f32.mrb[0].mxu0
        %v1612 = vadd.f32 0.0, %v1611
        %v1613 = vpop.f32.mrb[0].mxu0
        %1614 = vmatprep.mubr.f32.mxu0 0.0
        %1615 = vmatmul.mubr.f32.gmra.mrb[0].mxu0 %v795
        %v1616 = vpop.f32.mrb[0].mxu0
        %v1617 = vadd.f32 0.0, %v1616
        %v1618 = vpop.f32.mrb[0].mxu0
        %1619 = vmatprep.mubr.f32.mxu0 0.0
        %1620 = vmatmul.mubr.f32.gmra.mrb[0].mxu0 %v798
        %v1621 = vpop.f32.mrb[0].mxu0
        %v1622 = vadd.f32 0.0, %v1621
        %v1623 = vpop.f32.mrb[0].mxu0
        %1624 = vmatprep.mubr.f32.mxu0 0.0
        %1625 = vmatmul.mubr.f32.gmra.mrb[0].mxu0 %v801
        %v1626 = vpop.f32.mrb[0].mxu0
        %v1627 = vadd.f32 0.0, %v1626
        %v1628 = vpop.f32.mrb[0].mxu0
        %1629 = vmatprep.mubr.f32.mxu0 0.0
        %1630 = vmatmul.mubr.f32.gmra.mrb[0].mxu0 %v804
        %v1631 = vpop.f32.mrb[0].mxu0
        %v1632 = vadd.f32 0.0, %v1631
        %v1633 = vpop.f32.mrb[0].mxu0
        %1634 = vmatprep.mubr.f32.mxu0 0.0
        %1635 = vmatmul.mubr.f32.gmra.mrb[0].mxu0 %v807
        %v1636 = vpop.f32.mrb[0].mxu0
        %v1637 = vadd.f32 0.0, %v1636
        %v1638 = vpop.f32.mrb[0].mxu0
        %1639 = vmatprep.mubr.f32.mxu0 0.0
        %1640 = vmatmul.mubr.f32.gmra.mrb[0].mxu0 %v810
        %v1641 = vpop.f32.mrb[0].mxu0
        %v1642 = vadd.f32 0.0, %v1641
        %v1643 = vpop.f32.mrb[0].mxu0
        %1644 = vmatprep.mubr.f32.mxu0 0.0
        %1645 = vmatmul.mubr.f32.gmra.mrb[0].mxu0 %v1540
        %v1646 = vpop.f32.mrb[0].mxu0
        %v1647 = vadd.f32 0.0, %v1646
        %v1648 = vpop.f32.mrb[0].mxu0
        %1649 = vdwg.mxu0
        %v1650 = vadd.f32 %v1529, %v1612
        %v1651 = vadd.f32 %v1530, %v1617
        %v1652 = vadd.f32 %v1531, %v1622
        %v1653 = vadd.f32 %v1532, %v1627
        %v1654 = vadd.f32 %v1533, %v1632
        %v1655 = vadd.f32 %v1534, %v1637
        %v1656 = vadd.f32 %v1535, %v1642
        %v1657 = vadd.f32 %v1536, %v1647
        %s1658 = scalar_lea.vmem %s6, 28
        %v1659 = vld [vmem:[%s1658] sm:$0xf]
        %v1661 = vsel %vm654, %v650, 0
        %v1664 = vsel %vm679, %v1659, 0
        %1666 = vmatprep.subr.mxu0 0.0
        %1667 = vmatpush1.msra.mxu0 %v1664
        %1668 = vmatprep.subr.mxu0 0.0
        %1669 = vmatpush1.msra.mxu0 0.0
        %1670 = vmatprep.subr.mxu0 0.0
        %1671 = vmatpush1.msra.mxu0 0.0
        %1672 = vmatprep.subr.mxu0 0.0
        %1673 = vmatpush1.msra.mxu0 0.0
        %1674 = vmatprep.subr.mxu0 0.0
        %1675 = vmatpush1.msra.mxu0 0.0
        %1676 = vmatprep.subr.mxu0 0.0
        %1677 = vmatpush1.msra.mxu0 0.0
        %1678 = vmatprep.subr.mxu0 0.0
        %1679 = vmatpush1.msra.mxu0 0.0
        %1680 = vmatprep.subr.mxu0 0.0
        %1681 = vmatpush1.msra.mxu0 0.0
        %1682 = vmatprep.subr.mxu0 0.0
        %1683 = vmatpush1.msra.mxu0 0.0
        %1684 = vmatprep.subr.mxu0 0.0
        %1685 = vmatpush1.msra.mxu0 0.0
        %1686 = vmatprep.subr.mxu0 0.0
        %1687 = vmatpush1.msra.mxu0 0.0
        %1688 = vmatprep.subr.mxu0 0.0
        %1689 = vmatpush1.msra.mxu0 0.0
        %1690 = vmatprep.subr.mxu0 0.0
        %1691 = vmatpush1.msra.mxu0 0.0
        %1692 = vmatprep.subr.mxu0 0.0
        %1693 = vmatpush1.msra.mxu0 0.0
        %1694 = vmatprep.subr.mxu0 0.0
        %1695 = vmatpush1.msra.mxu0 0.0
        %1696 = vmatprep.subr.mxu0 0.0
        %1697 = vmatpush1.msra.mxu0 0.0
        %1698 = vmatprep.subr.mxu0 0.0
        %1699 = vmatpush1.msra.mxu0 0.0
        %1700 = vmatprep.subr.mxu0 0.0
        %1701 = vmatpush1.msra.mxu0 0.0
        %1702 = vmatprep.subr.mxu0 0.0
        %1703 = vmatpush1.msra.mxu0 0.0
        %1704 = vmatprep.subr.mxu0 0.0
        %1705 = vmatpush1.msra.mxu0 0.0
        %1706 = vmatprep.subr.mxu0 0.0
        %1707 = vmatpush1.msra.mxu0 0.0
        %1708 = vmatprep.subr.mxu0 0.0
        %1709 = vmatpush1.msra.mxu0 0.0
        %1710 = vmatprep.subr.mxu0 0.0
        %1711 = vmatpush1.msra.mxu0 0.0
        %1712 = vmatprep.subr.mxu0 0.0
        %1713 = vmatpush1.msra.mxu0 0.0
        %1714 = vmatprep.subr.mxu0 0.0
        %1715 = vmatpush1.msra.mxu0 0.0
        %1716 = vmatprep.subr.mxu0 0.0
        %1717 = vmatpush1.msra.mxu0 0.0
        %1718 = vmatprep.subr.mxu0 0.0
        %1719 = vmatpush1.msra.mxu0 0.0
        %1720 = vmatprep.subr.mxu0 0.0
        %1721 = vmatpush1.msra.mxu0 0.0
        %1722 = vmatprep.subr.mxu0 0.0
        %1723 = vmatpush1.msra.mxu0 0.0
        %1724 = vmatprep.subr.mxu0 0.0
        %1725 = vmatpush1.msra.mxu0 0.0
        %1726 = vmatprep.subr.mxu0 0.0
        %1727 = vmatpush1.msra.mxu0 0.0
        %1728 = vmatprep.subr.mxu0 0.0
        %1729 = vmatpush1.msra.mxu0 0.0
        %1730 = vmatprep.mubr.f32.mxu0 0.0
        %1731 = vmatmul.mubr.f32.gmra.mrb[0].mxu0 %v659
        %v1732 = vpop.f32.mrb[0].mxu0
        %v1733 = vadd.f32 0.0, %v1732
        %v1734 = vpop.f32.mrb[0].mxu0
        %1735 = vmatprep.mubr.f32.mxu0 0.0
        %1736 = vmatmul.mubr.f32.gmra.mrb[0].mxu0 %v662
        %v1737 = vpop.f32.mrb[0].mxu0
        %v1738 = vadd.f32 0.0, %v1737
        %v1739 = vpop.f32.mrb[0].mxu0
        %1740 = vmatprep.mubr.f32.mxu0 0.0
        %1741 = vmatmul.mubr.f32.gmra.mrb[0].mxu0 %v665
        %v1742 = vpop.f32.mrb[0].mxu0
        %v1743 = vadd.f32 0.0, %v1742
        %v1744 = vpop.f32.mrb[0].mxu0
        %1745 = vmatprep.mubr.f32.mxu0 0.0
        %1746 = vmatmul.mubr.f32.gmra.mrb[0].mxu0 %v668
        %v1747 = vpop.f32.mrb[0].mxu0
        %v1748 = vadd.f32 0.0, %v1747
        %v1749 = vpop.f32.mrb[0].mxu0
        %1750 = vmatprep.mubr.f32.mxu0 0.0
        %1751 = vmatmul.mubr.f32.gmra.mrb[0].mxu0 %v671
        %v1752 = vpop.f32.mrb[0].mxu0
        %v1753 = vadd.f32 0.0, %v1752
        %v1754 = vpop.f32.mrb[0].mxu0
        %1755 = vmatprep.mubr.f32.mxu0 0.0
        %1756 = vmatmul.mubr.f32.gmra.mrb[0].mxu0 %v674
        %v1757 = vpop.f32.mrb[0].mxu0
        %v1758 = vadd.f32 0.0, %v1757
        %v1759 = vpop.f32.mrb[0].mxu0
        %1760 = vmatprep.mubr.f32.mxu0 0.0
        %1761 = vmatmul.mubr.f32.gmra.mrb[0].mxu0 %v677
        %v1762 = vpop.f32.mrb[0].mxu0
        %v1763 = vadd.f32 0.0, %v1762
        %v1764 = vpop.f32.mrb[0].mxu0
        %1765 = vmatprep.mubr.f32.mxu0 0.0
        %1766 = vmatmul.mubr.f32.gmra.mrb[0].mxu0 %v1661
        %v1767 = vpop.f32.mrb[0].mxu0
        %v1768 = vadd.f32 0.0, %v1767
        %v1769 = vpop.f32.mrb[0].mxu0
        %1770 = vdwg.mxu0
        %v1771 = vadd.f32 %v1650, %v1733
        %v1772 = vadd.f32 %v1651, %v1738
        %v1773 = vadd.f32 %v1652, %v1743
        %v1774 = vadd.f32 %v1653, %v1748
        %v1775 = vadd.f32 %v1654, %v1753
        %v1776 = vadd.f32 %v1655, %v1758
        %v1777 = vadd.f32 %v1656, %v1763
        %v1778 = vadd.f32 %v1657, %v1768
        %v1780 = vrot.slane %v648, 1
        %v1781 = vrot.slane %v649, 1
        %v1782 = vsel %vm928, %v1780, %v1781
        %s1783 = scalar_lea.vmem %s6, 32
        %v1784 = vld [vmem:[%s1783] sm:$0xf]
        %v1785 = vsel %vm654, %v1782, 0
        %v1788 = vsel %vm679, %v1784, 0
        %1790 = vmatprep.subr.mxu0 0.0
        %1791 = vmatpush1.msra.mxu0 %v1788
        %1792 = vmatprep.subr.mxu0 0.0
        %1793 = vmatpush1.msra.mxu0 0.0
        %1794 = vmatprep.subr.mxu0 0.0
        %1795 = vmatpush1.msra.mxu0 0.0
        %1796 = vmatprep.subr.mxu0 0.0
        %1797 = vmatpush1.msra.mxu0 0.0
        %1798 = vmatprep.subr.mxu0 0.0
        %1799 = vmatpush1.msra.mxu0 0.0
        %1800 = vmatprep.subr.mxu0 0.0
        %1801 = vmatpush1.msra.mxu0 0.0
        %1802 = vmatprep.subr.mxu0 0.0
        %1803 = vmatpush1.msra.mxu0 0.0
        %1804 = vmatprep.subr.mxu0 0.0
        %1805 = vmatpush1.msra.mxu0 0.0
        %1806 = vmatprep.subr.mxu0 0.0
        %1807 = vmatpush1.msra.mxu0 0.0
        %1808 = vmatprep.subr.mxu0 0.0
        %1809 = vmatpush1.msra.mxu0 0.0
        %1810 = vmatprep.subr.mxu0 0.0
        %1811 = vmatpush1.msra.mxu0 0.0
        %1812 = vmatprep.subr.mxu0 0.0
        %1813 = vmatpush1.msra.mxu0 0.0
        %1814 = vmatprep.subr.mxu0 0.0
        %1815 = vmatpush1.msra.mxu0 0.0
        %1816 = vmatprep.subr.mxu0 0.0
        %1817 = vmatpush1.msra.mxu0 0.0
        %1818 = vmatprep.subr.mxu0 0.0
        %1819 = vmatpush1.msra.mxu0 0.0
        %1820 = vmatprep.subr.mxu0 0.0
        %1821 = vmatpush1.msra.mxu0 0.0
        %1822 = vmatprep.subr.mxu0 0.0
        %1823 = vmatpush1.msra.mxu0 0.0
        %1824 = vmatprep.subr.mxu0 0.0
        %1825 = vmatpush1.msra.mxu0 0.0
        %1826 = vmatprep.subr.mxu0 0.0
        %1827 = vmatpush1.msra.mxu0 0.0
        %1828 = vmatprep.subr.mxu0 0.0
        %1829 = vmatpush1.msra.mxu0 0.0
        %1830 = vmatprep.subr.mxu0 0.0
        %1831 = vmatpush1.msra.mxu0 0.0
        %1832 = vmatprep.subr.mxu0 0.0
        %1833 = vmatpush1.msra.mxu0 0.0
        %1834 = vmatprep.subr.mxu0 0.0
        %1835 = vmatpush1.msra.mxu0 0.0
        %1836 = vmatprep.subr.mxu0 0.0
        %1837 = vmatpush1.msra.mxu0 0.0
        %1838 = vmatprep.subr.mxu0 0.0
        %1839 = vmatpush1.msra.mxu0 0.0
        %1840 = vmatprep.subr.mxu0 0.0
        %1841 = vmatpush1.msra.mxu0 0.0
        %1842 = vmatprep.subr.mxu0 0.0
        %1843 = vmatpush1.msra.mxu0 0.0
        %1844 = vmatprep.subr.mxu0 0.0
        %1845 = vmatpush1.msra.mxu0 0.0
        %1846 = vmatprep.subr.mxu0 0.0
        %1847 = vmatpush1.msra.mxu0 0.0
        %1848 = vmatprep.subr.mxu0 0.0
        %1849 = vmatpush1.msra.mxu0 0.0
        %1850 = vmatprep.subr.mxu0 0.0
        %1851 = vmatpush1.msra.mxu0 0.0
        %1852 = vmatprep.subr.mxu0 0.0
        %1853 = vmatpush1.msra.mxu0 0.0
        %1854 = vmatprep.mubr.f32.mxu0 0.0
        %1855 = vmatmul.mubr.f32.gmra.mrb[0].mxu0 %v957
        %v1856 = vpop.f32.mrb[0].mxu0
        %v1857 = vadd.f32 0.0, %v1856
        %v1858 = vpop.f32.mrb[0].mxu0
        %1859 = vmatprep.mubr.f32.mxu0 0.0
        %1860 = vmatmul.mubr.f32.gmra.mrb[0].mxu0 %v959
        %v1861 = vpop.f32.mrb[0].mxu0
        %v1862 = vadd.f32 0.0, %v1861
        %v1863 = vpop.f32.mrb[0].mxu0
        %1864 = vmatprep.mubr.f32.mxu0 0.0
        %1865 = vmatmul.mubr.f32.gmra.mrb[0].mxu0 %v961
        %v1866 = vpop.f32.mrb[0].mxu0
        %v1867 = vadd.f32 0.0, %v1866
        %v1868 = vpop.f32.mrb[0].mxu0
        %1869 = vmatprep.mubr.f32.mxu0 0.0
        %1870 = vmatmul.mubr.f32.gmra.mrb[0].mxu0 %v963
        %v1871 = vpop.f32.mrb[0].mxu0
        %v1872 = vadd.f32 0.0, %v1871
        %v1873 = vpop.f32.mrb[0].mxu0
        %1874 = vmatprep.mubr.f32.mxu0 0.0
        %1875 = vmatmul.mubr.f32.gmra.mrb[0].mxu0 %v965
        %v1876 = vpop.f32.mrb[0].mxu0
        %v1877 = vadd.f32 0.0, %v1876
        %v1878 = vpop.f32.mrb[0].mxu0
        %1879 = vmatprep.mubr.f32.mxu0 0.0
        %1880 = vmatmul.mubr.f32.gmra.mrb[0].mxu0 %v967
        %v1881 = vpop.f32.mrb[0].mxu0
        %v1882 = vadd.f32 0.0, %v1881
        %v1883 = vpop.f32.mrb[0].mxu0
        %1884 = vmatprep.mubr.f32.mxu0 0.0
        %1885 = vmatmul.mubr.f32.gmra.mrb[0].mxu0 %v969
        %v1886 = vpop.f32.mrb[0].mxu0
        %v1887 = vadd.f32 0.0, %v1886
        %v1888 = vpop.f32.mrb[0].mxu0
        %1889 = vmatprep.mubr.f32.mxu0 0.0
        %1890 = vmatmul.mubr.f32.gmra.mrb[0].mxu0 %v1785
        %v1891 = vpop.f32.mrb[0].mxu0
        %v1892 = vadd.f32 0.0, %v1891
        %v1893 = vpop.f32.mrb[0].mxu0
        %1894 = vdwg.mxu0
        %v1895 = vadd.f32 %v1771, %v1857
        %v1896 = vadd.f32 %v1772, %v1862
        %v1897 = vadd.f32 %v1773, %v1867
        %v1898 = vadd.f32 %v1774, %v1872
        %v1899 = vadd.f32 %v1775, %v1877
        %v1900 = vadd.f32 %v1776, %v1882
        %v1901 = vadd.f32 %v1777, %v1887
        %v1902 = vadd.f32 %v1778, %v1892
        %1903 = vst [vmem:[%s506] sm:$0xff] %v1895
        %1904 = vst [vmem:[%s506 + $0x8] sm:$0xff] %v1896
        %1905 = vst [vmem:[%s506 + $0x10] sm:$0xff] %v1897
        %1906 = vst [vmem:[%s506 + $0x18] sm:$0xff] %v1898
        %1907 = vst [vmem:[%s506 + $0x20] sm:$0xff] %v1899
        %1908 = vst [vmem:[%s506 + $0x28] sm:$0xff] %v1900
        %1909 = vst [vmem:[%s506 + $0x30] sm:$0xff] %v1901
        %1910 = vst [vmem:[%s506 + $0x38] sm:$0xff] %v1902
        %s1911 = smul.u32 %s31, 8
        %s1912 = ssub.s32 8, %s1911
        %p1913 = scmp.gt.s32.totalorder %s1912, 0
        %s1914 = scalar_select %p1913, %s1912, 0
        %p1915 = scmp.lt.s32.totalorder %s1914, 8
        %s1916 = scalar_select %p1915, %s1914, 8
        %v1917 = vlaneseq
        %v1918 = vshrl.u32 %v1917, 7
        %v1919 = vstv %s1916
        %vm1920 = vcmp.gt.s32.totalorder %v1919, 0
        %vm1921 = vcmp.gt.s32.totalorder %v1919, 1
        %vm1922 = vcmp.gt.s32.totalorder %v1919, 2
        %vm1923 = vcmp.gt.s32.totalorder %v1919, 3
        %vm1924 = vcmp.gt.s32.totalorder %v1919, 4
        %vm1925 = vcmp.gt.s32.totalorder %v1919, 5
        %vm1926 = vcmp.gt.s32.totalorder %v1919, 6
        %vm1927 = vcmp.gt.s32.totalorder %v1919, 7
        %vm1928 = vcmp.lt.s32.totalorder %v1918, 8
        %vm1929 = vmand %vm1920, %vm1928
        %vm1930 = vmand %vm1921, %vm1928
        %vm1931 = vmand %vm1922, %vm1928
        %vm1932 = vmand %vm1923, %vm1928
        %vm1933 = vmand %vm1924, %vm1928
        %vm1934 = vmand %vm1925, %vm1928
        %vm1935 = vmand %vm1926, %vm1928
        %vm1936 = vmand %vm1927, %vm1928
        %v1937 = vsel %vm1929, 1, 0
        %v1938 = vsel %vm1930, 1, 0
        %v1939 = vsel %vm1931, 1, 0
        %v1940 = vsel %vm1932, 1, 0
        %v1941 = vsel %vm1933, 1, 0
        %v1942 = vsel %vm1934, 1, 0
        %v1943 = vsel %vm1935, 1, 0
        %v1944 = vsel %vm1936, 1, 0
        %vm1945 = vcmp.eq.s32.totalorder %v1937, 1
        %vm1946 = vcmp.eq.s32.totalorder %v1938, 1
        %vm1947 = vcmp.eq.s32.totalorder %v1939, 1
        %vm1948 = vcmp.eq.s32.totalorder %v1940, 1
        %vm1949 = vcmp.eq.s32.totalorder %v1941, 1
        %vm1950 = vcmp.eq.s32.totalorder %v1942, 1
        %vm1951 = vcmp.eq.s32.totalorder %v1943, 1
        %vm1952 = vcmp.eq.s32.totalorder %v1944, 1
        %v1953 = vsel %vm1945, %v1895, 0.0
        %v1954 = vsel %vm1946, %v1896, 0.0
        %v1955 = vsel %vm1947, %v1897, 0.0
        %v1956 = vsel %vm1948, %v1898, 0.0
        %v1957 = vsel %vm1949, %v1899, 0.0
        %v1958 = vsel %vm1950, %v1900, 0.0
        %v1959 = vsel %vm1951, %v1901, 0.0
        %v1960 = vsel %vm1952, %v1902, 0.0
        %v1961 = vadd.f32 %v1953, %v1954
        %v1962 = vadd.f32 %v1961, %v1955
        %v1963 = vadd.f32 %v1962, %v1956
        %v1964 = vadd.f32 %v1963, %v1957
        %v1965 = vadd.f32 %v1964, %v1958
        %v1966 = vadd.f32 %v1965, %v1959
        %v1967 = vadd.f32 %v1966, %v1960
        %v1968 = vrot.slane %v1967, 4
        %v1969 = vadd.f32 %v1967, %v1968
        %v1970 = vrot.slane %v1969, 2
        %v1971 = vadd.f32 %v1969, %v1970
        %v1972 = vrot.slane %v1971, 1
        %v1973 = vadd.f32 %v1971, %v1972
        %v1974 = vmul.f32 %v1953, %v1953
        %v1975 = vmul.f32 %v1954, %v1954
        %v1976 = vmul.f32 %v1955, %v1955
        %v1977 = vmul.f32 %v1956, %v1956
        %v1978 = vmul.f32 %v1957, %v1957
        %v1979 = vmul.f32 %v1958, %v1958
        %v1980 = vmul.f32 %v1959, %v1959
        %v1981 = vmul.f32 %v1960, %v1960
        %v1982 = vadd.f32 %v1974, %v1975
        %v1983 = vadd.f32 %v1982, %v1976
        %v1984 = vadd.f32 %v1983, %v1977
        %v1985 = vadd.f32 %v1984, %v1978
        %v1986 = vadd.f32 %v1985, %v1979
        %v1987 = vadd.f32 %v1986, %v1980
        %v1988 = vadd.f32 %v1987, %v1981
        %v1989 = vrot.slane %v1988, 4
        %v1990 = vadd.f32 %v1988, %v1989
        %v1991 = vrot.slane %v1990, 2
        %v1992 = vadd.f32 %v1990, %v1991
        %v1993 = vrot.slane %v1992, 1
        %v1994 = vadd.f32 %v1992, %v1993
        %vm1995 = vcmask 1040384
        %v1996 = vsel %vm1995, %v1973, %v1994
        %vm1997 = vcmask 1041408
        %v1998 = vsel %vm1997, %v1996, 0.0
        %1999 = vst [vmem:[%s513] sm:$0xff] %v1998
        %s2000 = sand.u32 %s245, 1
        %s2001 = scalar_lea.sflag [#allocation3], %s2000
        %s2002 = sand.u32 %s245, 1
        %s2003 = smul.addr %s2002, 64
        %s2004 = scalar_lea.vmem [#allocation2], %s2003
        %s2005 = sand.u32 %s273, 1
        %s2006 = scalar_lea.sflag [#allocation5], %s2005
        %s2007 = sand.u32 %s273, 1
        %s2008 = smul.addr %s2007, 8
        %s2009 = scalar_lea.vmem [#allocation4], %s2008
        // Predicated region
        $region49: #{tpu_custom_call.1} parent=47 // pred_check
          %p2010 = pneg %p255
        $region50: #{tpu_custom_call.1} parent=47 // pred_check_branch
          %2012 = sbr.rel (%p2010) target = $region52
        $region51: #{tpu_custom_call.1} parent=47 // pred_region
          %s2013 = smul.u32 8, %s31
          %s2015 = ssub.s32 1024, 1024
          %2016 = vsyncadd %s2001, %s2015
          %s2017 = smul.addr %s30, 8
          %s2018 = sadd.s32 %s2013, %s2017
          %s2019 = smul.addr %s2018, 128
          %s2020 = scalar_lea.hbm %s7, %s2019
          %s2021 = sshll.u32 %s2004, 4
          %s2022 = int_to_ptr.vmem [resolvable:$true] %s2021
          %2027 = dma.vmem_to_hbm [thread:$0]  %s2022, 1024, %s2020, %s2001, 128, 128, 8
        $region52: #{tpu_custom_call.1} parent=47 // pred_fallthru
          _
        // Predicated region
        $region53: #{tpu_custom_call.1} parent=47 // pred_check
          %p2028 = pneg %p283
        $region54: #{tpu_custom_call.1} parent=47 // pred_check_branch
          %2030 = sbr.rel (%p2028) target = $region56
        $region55: #{tpu_custom_call.1} parent=47 // pred_region
          %s2032 = ssub.s32 128, 128
          %2033 = vsyncadd %s2006, %s2032
          %s2034 = sadd.s32 %s31, %s30
          %s2035 = smul.addr %s2034, 128
          %s2036 = scalar_lea.hbm %s8, %s2035
          %s2038 = sshll.u32 %s2009, 4
          %s2039 = int_to_ptr.vmem [resolvable:$true] %s2038
          %2041 = dma.vmem_to_hbm [thread:$0]  %s2039, 128, %s2036, %s2006
        $region56: #{tpu_custom_call.1} parent=47 // pred_fallthru
          _
      $region48: #{tpu_custom_call.1} parent=5 // pred_fallthru
        _
      %p2042 = scmp.le.s32.totalorder 2, %s21
      // Predicated region
      $region57: #{tpu_custom_call.1} parent=5 // pred_check
        %p2043 = pneg %p2042
      $region58: #{tpu_custom_call.1} parent=5 // pred_check_branch
        %2045 = sbr.rel (%p2043) target = $region60
      $region59: #{tpu_custom_call.1} parent=5 // pred_region
        %s2046 = ssub.s32 %s21, 2
        // Predicated region
        $region61: #{tpu_custom_call.1} parent=59 // pred_check
          %p2047 = pneg %p261
        $region62: #{tpu_custom_call.1} parent=59 // pred_check_branch
          %2049 = sbr.rel (%p2047) target = $region64
        $region63: #{tpu_custom_call.1} parent=59 // pred_region
          %s2050 = sand.u32 %s246, 1
          %s2051 = scalar_lea.sflag [#allocation3], %s2050
          %s2052 = sand.u32 %s246, 1
          %s2053 = smul.addr %s2052, 64
          %s2054 = scalar_lea.vmem [#allocation2], %s2053
          %2055 = dma.done %s2051, 1024
        $region64: #{tpu_custom_call.1} parent=59 // pred_fallthru
          _
        // Predicated region
        $region65: #{tpu_custom_call.1} parent=59 // pred_check
          %p2056 = pneg %p289
        $region66: #{tpu_custom_call.1} parent=59 // pred_check_branch
          %2058 = sbr.rel (%p2056) target = $region68
        $region67: #{tpu_custom_call.1} parent=59 // pred_region
          %s2059 = sand.u32 %s274, 1
          %s2060 = scalar_lea.sflag [#allocation5], %s2059
          %s2061 = sand.u32 %s274, 1
          %s2062 = smul.addr %s2061, 8
          %s2063 = scalar_lea.vmem [#allocation4], %s2062
          %2064 = dma.done %s2060, 128
        $region68: #{tpu_custom_call.1} parent=59 // pred_fallthru
          _
      $region60: #{tpu_custom_call.1} parent=5 // pred_fallthru
        _
    $region6: #{tpu_custom_call.1} parent=1 // loop_footer
      %s25 = sadd.s32 1, %s21
    $region7: #{tpu_custom_call.1} parent=1 // loop_footer_branch
      %20 = sbr.rel target = $region3
    $region8: #{tpu_custom_call.1} parent=1 // loop_exit
      _
    %2065 = vsyncpa [#allocation3], 1
    %s2066 = scalar_lea.sflag [#allocation3], 1
    %2067 = vsyncpa %s2066, 1
    %2068 = vsyncpa [#allocation5], 1
    %s2069 = scalar_lea.sflag [#allocation5], 1
    %2070 = vsyncpa %s2069, 1

</llo_original>
